<compile_context>
chip_gen: v5e
topology: v5e:2x2
jax: 0.10.0
libtpu: 0.0.40
codegen_flags: <defaults>
</compile_context>

<pallas_src>
import jax
import jax.numpy as jnp
from jax.experimental import pallas as pl
from jax.experimental.pallas import tpu as pltpu


def _round_up(x, m):
    return ((x + m - 1) // m) * m


def _prelu(x, a):
    # PyTorch nn.PReLU(num_parameters=1): max(0,x) + a*min(0,x)
    return jnp.where(x > 0, x, a * x)


def din_kernel(behavior_ref, cand_ref, profile_ref,
               w_bp_ref, w_cand_ref, b1a_ref, w2a_ref,
               w1_ref, b1_ref, w2_ref, b2_ref, w3_ref,
               scal_ref, out_ref):
    """One batch tile of the DIN forward.

    behavior: (TB, F, E) bf16   candidate: (TB, E) bf16   profile: (TB, P) bf16
    out: (TB, 1) f32 sigmoid scores.
    """
    f32 = jnp.float32

    behavior = behavior_ref[...]                        # (TB, F, E) bf16
    cand = cand_ref[...]                                # (TB, E)    bf16
    TB, F, E = behavior.shape
    cdt = behavior.dtype

    pa = scal_ref[0]      # attention PReLU slope
    p1 = scal_ref[1]      # deep PReLU 1 slope
    p2 = scal_ref[2]      # deep PReLU 2 slope
    b2a = scal_ref[3]     # attention logit bias
    b3 = scal_ref[4]      # final logit bias

    # --- Attention_ElementWiseProduct (concat-fold + candidate hoist) --------
    # torch: cat([b, c, b-c, b*c], -1) @ W1a
    #      == [b ; b*c] @ [Wb+Wd ; Wp]   +   c @ (Wc - Wd)
    # The candidate term is identical for every F slot, so it is computed once
    # per tile at M=TB and broadcast; the remaining two K=E matmuls are fused
    # along K into a single (TB*F, 2E) x (2E, 32) matmul.
    prod = behavior * cand[:, None, :]                              # (TB,F,E) bf16
    beh_prod = jnp.concatenate([behavior, prod], axis=-1)           # (TB,F,2E) bf16
    h = jnp.dot(beh_prod.reshape(TB * F, 2 * E), w_bp_ref[...],
                preferred_element_type=f32).reshape(TB, F, -1)      # (TB,F,32) f32
    cand_h = jnp.dot(cand, w_cand_ref[...],
                     preferred_element_type=f32)                    # (TB,32)  f32
    h = _prelu(h + cand_h[:, None, :] + b1a_ref[...], pa)           # (TB,F,32)

    # 1-wide projection as VPU multiply + lane reduce (no N=1 MXU matmul).
    att = jax.nn.sigmoid(
        jnp.sum(h * w2a_ref[...], axis=-1, keepdims=True) + b2a)    # (TB,F,1)

    pooled = jnp.sum(att * behavior.astype(f32), axis=1)            # (TB,E) f32

    # --- deep tower: single fused K = P + 2E matmul ---------------------------
    # torch: cat([sparse, dense, pooled, cand], 1) @ W1
    deep_in = jnp.concatenate(
        [profile_ref[...], pooled.astype(cdt), cand], axis=-1)      # (TB,P+2E) bf16
    d = jnp.dot(deep_in, w1_ref[...], preferred_element_type=f32) + b1_ref[...]
    d = _prelu(d, p1)                                               # (TB, 128)
    d = jnp.dot(d.astype(cdt), w2_ref[...],
                preferred_element_type=f32) + b2_ref[...]
    d = _prelu(d, p2)                                               # (TB, 64)

    # final 1-wide projection as a VPU reduce; sigmoid on the EUP.
    logit = jnp.sum(d * w3_ref[...], axis=-1, keepdims=True) + b3   # (TB, 1)
    out_ref[...] = jax.nn.sigmoid(logit)


def din_forward(params, sparse_feature, dense_feature, sparse_ratio, block_b=None):
    """Embedding gather (XLA glue, bf16) + one batch-tiled Pallas kernel."""
    bf16 = jnp.bfloat16
    n_profile, n_behavior = sparse_ratio
    B = sparse_feature.shape[0]

    # --- batch tiling ---------------------------------------------------------
    # Large tiles amortize the ~0.35us per-grid-step pipeline overhead; clamp so
    # the single grid axis has >= 2 tiles (v7x: both TensorCores get work under
    # dimension_semantics=("parallel",)).  Working set at TB=1024 (bf16 streams)
    # is a few MiB — far below every generation's scoped-VMEM ceiling.
    if block_b is None:
        block_b = 1024
    TB = max(16, _round_up(min(block_b, B), 16))        # 16: bf16 sublane packing
    if B >= 32:
        TB = min(TB, _round_up((B + 1) // 2, 16))       # keep >= 2 grid tiles
    B_pad = _round_up(B, TB)
    G = B_pad // TB

    # Pad the *indices / dense features* (tiny) before the gather, so the large
    # gathered activations never get an extra HBM pad copy.  Index 0 is valid,
    # so padded rows gather in-bounds; they are sliced off at the end.
    if B_pad != B:
        pad = B_pad - B
        sparse_feature = jnp.pad(sparse_feature, ((0, pad), (0, 0)))
        dense_feature = jnp.pad(dense_feature, ((0, pad), (0, 0)))

    # --- embedding gather (XLA glue), streamed to the kernel in bf16 ----------
    embs = [tbl.astype(bf16)[sparse_feature[:, i]]
            for i, tbl in enumerate(params["emb_tables"])]
    sparse_embedding = jnp.concatenate(embs[:n_profile], axis=1)          # (Bp, S)
    behavior = jnp.stack(embs[n_profile:n_profile + n_behavior], axis=1)  # (Bp, F, E)
    candidate = embs[-1]                                                  # (Bp, E)
    profile = jnp.concatenate(
        [sparse_embedding, dense_feature.astype(bf16)], axis=1)           # (Bp, P)

    F = n_behavior
    E = candidate.shape[1]
    P = profile.shape[1]
    H = params["w1a"].shape[1]          # attention hidden (32)
    D1 = params["w1"].shape[1]          # 128
    D2 = params["w2"].shape[1]          # 64

    # --- weight preprocessing: fold the 4E attention concat, cast to bf16 -----
    # torch: cat([b, c, b-c, b*c], -1) @ W1a == [b; b*c]@[Wb+Wd; Wp] + c@(Wc-Wd)
    w1a = params["w1a"]                 # (4E, 32) rows: [beh; cand; diff; prod]
    wb, wc, wd, wp = w1a[:E], w1a[E:2 * E], w1a[2 * E:3 * E], w1a[3 * E:]
    w_bp = jnp.concatenate([wb + wd, wp], axis=0).astype(bf16)            # (2E, 32)
    w_cand = (wc - wd).astype(bf16)                                       # (E, 32)

    w1 = params["w1"].astype(bf16)      # (P+2E, 128) rows: [sparse;dense;pool;cand]
    w2 = params["w2"].astype(bf16)      # (128, 64)

    b1a = params["b1a"].reshape(1, H)
    w2a_row = params["w2a"].reshape(1, H)
    b1 = params["b1"].reshape(1, D1)
    b2 = params["b2"].reshape(1, D2)
    w3_row = params["w3"].reshape(1, D2)

    # packed SMEM scalars: [prelu_attn, prelu1, prelu2, b2a, b3]
    scal = jnp.stack([params["pa"].reshape(()), params["p1"].reshape(()),
                      params["p2"].reshape(()), params["b2a"].reshape(()),
                      params["b3"].reshape(())]).astype(jnp.float32)      # (5,)

    def const_spec(x):
        zeros = (0,) * x.ndim
        return pl.BlockSpec(x.shape, lambda i, z=zeros: z)   # resident across grid

    in_specs = [
        pl.BlockSpec((TB, F, E), lambda i: (i, 0, 0)),   # behavior tile (bf16)
        pl.BlockSpec((TB, E), lambda i: (i, 0)),         # candidate tile (bf16)
        pl.BlockSpec((TB, P), lambda i: (i, 0)),         # profile tile (bf16)
        const_spec(w_bp), const_spec(w_cand),
        const_spec(b1a), const_spec(w2a_row),
        const_spec(w1), const_spec(b1), const_spec(w2), const_spec(b2),
        const_spec(w3_row),
        pl.BlockSpec(memory_space=pltpu.MemorySpace.SMEM),   # packed scalars
    ]
    out_spec = pl.BlockSpec((TB, 1), lambda i: (i, 0))

    out = pl.pallas_call(
        din_kernel,
        out_shape=jax.ShapeDtypeStruct((B_pad, 1), jnp.float32),
        grid=(G,),
        in_specs=in_specs,
        out_specs=out_spec,
        compiler_params=pltpu.CompilerParams(
            dimension_semantics=("parallel",),   # v7x: 2 TCs split the batch tiles
            vmem_limit_bytes=32 * 1024 * 1024,
        ),
    )(behavior, candidate, profile,
      w_bp, w_cand, b1a, w2a_row, w1, b1, w2, b2, w3_row, scal)

    return out.reshape(-1)[:B]                                            # (B,)


def din_reference(params, sparse_feature, dense_feature, sparse_ratio):
    """Pure-JAX f32 reference mirroring the PyTorch forward (for validation)."""
    embs = [tbl[sparse_feature[:, i]] for i, tbl in enumerate(params["emb_tables"])]
    n_profile, n_behavior = sparse_ratio
    sparse_embedding = jnp.concatenate(embs[:n_profile], axis=1)
    behavior = jnp.stack(embs[n_profile:n_profile + n_behavior], axis=1)
    candidate = embs[-1]
    B, F, E = behavior.shape

    cand_b = jnp.broadcast_to(candidate[:, None, :], (B, F, E))
    embed_in = jnp.concatenate(
        [behavior, cand_b, behavior - cand_b, behavior * cand_b], axis=2)
    h = _prelu(embed_in @ params["w1a"] + params["b1a"], params["pa"][0])
    att = jax.nn.sigmoid(h @ params["w2a"] + params["b2a"])               # (B,F,1)
    pooled = jnp.sum(att * behavior, axis=1)
    deep_in = jnp.concatenate(
        [sparse_embedding, dense_feature, pooled, candidate], axis=1)
    d = _prelu(deep_in @ params["w1"] + params["b1"], params["p1"][0])
    d = _prelu(d @ params["w2"] + params["b2"], params["p2"][0])
    d = d @ params["w3"] + params["b3"]
    return jax.nn.sigmoid(d).reshape(-1)


def init_params(key, sparse_col_size, dense_col_size):
    # same sizing rule as the PyTorch __init__
    embedding_size = [int(6 * (c ** 0.25)) for c in sparse_col_size]
    E = embedding_size[3]                       # movieId embedding size
    deep_in = int(sum(embedding_size)) + dense_col_size - 4 * E

    keys = iter(jax.random.split(key, 64))

    def nrm(shape, scale):
        return jax.random.normal(next(keys), shape, jnp.float32) * scale

    emb_tables = [nrm((cs, es), 0.05)
                  for cs, es in zip(sparse_col_size, embedding_size)]

    params = dict(
        emb_tables=emb_tables,
        # attention MLP (weights stored as (in, out))
        w1a=nrm((4 * E, 32), 1.0 / (4 * E) ** 0.5),
        b1a=nrm((1, 32), 0.01),
        w2a=nrm((32, 1), 1.0 / 32 ** 0.5),
        b2a=nrm((1, 1), 0.01),
        # deep tower
        w1=nrm((deep_in, 128), 1.0 / deep_in ** 0.5),
        b1=nrm((1, 128), 0.01),
        w2=nrm((128, 64), 1.0 / 128 ** 0.5),
        b2=nrm((1, 64), 0.01),
        w3=nrm((64, 1), 1.0 / 64 ** 0.5),
        b3=nrm((1, 1), 0.01),
        # PReLU scalars (PyTorch default init 0.25)
        pa=jnp.full((1,), 0.25, jnp.float32),
        p1=jnp.full((1,), 0.25, jnp.float32),
        p2=jnp.full((1,), 0.25, jnp.float32),
    )
    return params, embedding_size, deep_in


if __name__ == "__main__":
    key = jax.random.PRNGKey(0)
    k_params, k_sparse, k_dense = jax.random.split(key, 3)

    # 3 profile cols + 5 behavior (movieId-like) cols + 1 candidate movieId col.
    sparse_col_size = [100, 10, 20, 4096, 4096, 4096, 4096, 4096, 4096]
    dense_col_size = 4
    sparse_ratio = [3, 5]
    B = 36          # not a tile multiple -> exercises index-padding + slicing
    BLOCK_B = 16    # 3 batch tiles -> exercises the grid + resident weights

    params, embedding_size, deep_in = init_params(
        k_params, sparse_col_size, dense_col_size)

    cols = []
    for i, cs in enumerate(sparse_col_size):
        cols.append(jax.random.randint(jax.random.fold_in(k_sparse, i),
                                       (B,), 0, cs, dtype=jnp.int32))
    sparse_feature = jnp.stack(cols, axis=1)               # (B, 9) int32
    dense_feature = jax.random.normal(k_dense, (B, dense_col_size), jnp.float32)

    out = din_forward(params, sparse_feature, dense_feature, sparse_ratio,
                      block_b=BLOCK_B)
    out = jax.block_until_ready(out)

    ref = jax.block_until_ready(
        din_reference(params, sparse_feature, dense_feature, sparse_ratio))

    assert out.shape == (B,)
    assert bool(jnp.all(jnp.isfinite(out)))
    assert bool(jnp.all((out >= 0.0) & (out <= 1.0)))
    max_err = float(jnp.max(jnp.abs(out - ref)))
    assert max_err < 2e-2, f"mismatch vs f32 reference: {max_err}"
    print("KERNEL_OK")
</pallas_src>

<mosaic_0001>
module attributes {stable_mosaic.version = 11 : i64} {
  func.func @din_kernel(%arg0: i32, %arg1: memref<16x5x48xbf16, #tpu.memory_space<vmem>>, %arg2: memref<16x48xbf16, #tpu.memory_space<vmem>>, %arg3: memref<16x44xbf16, #tpu.memory_space<vmem>>, %arg4: memref<96x32xbf16, #tpu.memory_space<vmem>>, %arg5: memref<48x32xbf16, #tpu.memory_space<vmem>>, %arg6: memref<1x32xf32, #tpu.memory_space<vmem>>, %arg7: memref<1x32xf32, #tpu.memory_space<vmem>>, %arg8: memref<140x128xbf16, #tpu.memory_space<vmem>>, %arg9: memref<1x128xf32, #tpu.memory_space<vmem>>, %arg10: memref<128x64xbf16, #tpu.memory_space<vmem>>, %arg11: memref<1x64xf32, #tpu.memory_space<vmem>>, %arg12: memref<1x64xf32, #tpu.memory_space<vmem>>, %arg13: memref<5xf32, #tpu.memory_space<smem>>, %arg14: memref<16x1xf32, #tpu.memory_space<vmem>>) attributes {dimension_semantics = [#tpu.dimension_semantics<parallel>], iteration_bounds = array<i64: 3>, scalar_prefetch = 0 : i64, scratch_operands = 0 : i64, tpu.core_type = #tpu.core_type<tc>, window_params = [{transform_indices = @transform_0, window_bounds = array<i64: 16, 5, 48>}, {transform_indices = @transform_1, window_bounds = array<i64: 16, 48>}, {transform_indices = @transform_2, window_bounds = array<i64: 16, 44>}, {pipeline_mode = #tpu.pipeline_mode<synchronous>, transform_indices = @transform_3, window_bounds = array<i64: 96, 32>}, {pipeline_mode = #tpu.pipeline_mode<synchronous>, transform_indices = @transform_4, window_bounds = array<i64: 48, 32>}, {pipeline_mode = #tpu.pipeline_mode<synchronous>, transform_indices = @transform_5, window_bounds = array<i64: 1, 32>}, {pipeline_mode = #tpu.pipeline_mode<synchronous>, transform_indices = @transform_6, window_bounds = array<i64: 1, 32>}, {pipeline_mode = #tpu.pipeline_mode<synchronous>, transform_indices = @transform_7, window_bounds = array<i64: 140, 128>}, {pipeline_mode = #tpu.pipeline_mode<synchronous>, transform_indices = @transform_8, window_bounds = array<i64: 1, 128>}, {pipeline_mode = #tpu.pipeline_mode<synchronous>, transform_indices = @transform_9, window_bounds = array<i64: 128, 64>}, {pipeline_mode = #tpu.pipeline_mode<synchronous>, transform_indices = @transform_10, window_bounds = array<i64: 1, 64>}, {pipeline_mode = #tpu.pipeline_mode<synchronous>, transform_indices = @transform_11, window_bounds = array<i64: 1, 64>}, {transform_indices = @transform_12, window_bounds = array<i64: 5>}, {transform_indices = @transform_13, window_bounds = array<i64: 16, 1>}]} {
    %c0 = arith.constant 0 : index
    %c0_0 = arith.constant 0 : index
    %c0_1 = arith.constant 0 : index
    %0 = vector.load %arg1[%c0, %c0_0, %c0_1] : memref<16x5x48xbf16, #tpu.memory_space<vmem>>, vector<16x5x48xbf16>
    %c0_2 = arith.constant 0 : index
    %c0_3 = arith.constant 0 : index
    %1 = vector.load %arg2[%c0_2, %c0_3] : memref<16x48xbf16, #tpu.memory_space<vmem>>, vector<16x48xbf16>
    %c0_4 = arith.constant 0 : index
    %2 = memref.load %arg13[%c0_4] : memref<5xf32, #tpu.memory_space<smem>>
    %c1 = arith.constant 1 : index
    %3 = memref.load %arg13[%c1] : memref<5xf32, #tpu.memory_space<smem>>
    %c2 = arith.constant 2 : index
    %4 = memref.load %arg13[%c2] : memref<5xf32, #tpu.memory_space<smem>>
    %c3 = arith.constant 3 : index
    %5 = memref.load %arg13[%c3] : memref<5xf32, #tpu.memory_space<smem>>
    %c4 = arith.constant 4 : index
    %6 = memref.load %arg13[%c4] : memref<5xf32, #tpu.memory_space<smem>>
    %7 = vector.shape_cast %1 : vector<16x48xbf16> to vector<16x1x48xbf16>
    %8 = vector.broadcast %7 : vector<16x1x48xbf16> to vector<16x5x48xbf16>
    %9 = arith.mulf %0, %8 : vector<16x5x48xbf16>
    %10 = tpu.concatenate %0, %9 in 2 : vector<16x5x48xbf16>, vector<16x5x48xbf16> -> vector<16x5x96xbf16>
    %11 = vector.shape_cast %10 : vector<16x5x96xbf16> to vector<80x96xbf16>
    %c0_5 = arith.constant 0 : index
    %c0_6 = arith.constant 0 : index
    %12 = vector.load %arg4[%c0_5, %c0_6] : memref<96x32xbf16, #tpu.memory_space<vmem>>, vector<96x32xbf16>
    %cst = arith.constant dense<0.000000e+00> : vector<80x32xf32>
    %13 = tpu.matmul %11, %12, %cst {dimension_numbers = #tpu.dot_dimension_numbers<[1], [0], [0], [1], [0, 0, 1, 1], [], []>} : vector<80x96xbf16>, vector<96x32xbf16>, vector<80x32xf32> -> vector<80x32xf32>
    %14 = vector.shape_cast %13 : vector<80x32xf32> to vector<16x5x32xf32>
    %c0_7 = arith.constant 0 : index
    %c0_8 = arith.constant 0 : index
    %15 = vector.load %arg5[%c0_7, %c0_8] : memref<48x32xbf16, #tpu.memory_space<vmem>>, vector<48x32xbf16>
    %cst_9 = arith.constant dense<0.000000e+00> : vector<16x32xf32>
    %16 = tpu.matmul %1, %15, %cst_9 {dimension_numbers = #tpu.dot_dimension_numbers<[1], [0], [0], [1], [0, 0, 1, 1], [], []>} : vector<16x48xbf16>, vector<48x32xbf16>, vector<16x32xf32> -> vector<16x32xf32>
    %17 = vector.shape_cast %16 : vector<16x32xf32> to vector<16x1x32xf32>
    %18 = vector.broadcast %17 : vector<16x1x32xf32> to vector<16x5x32xf32>
    %19 = arith.addf %14, %18 : vector<16x5x32xf32>
    %c0_10 = arith.constant 0 : index
    %c0_11 = arith.constant 0 : index
    %20 = vector.load %arg6[%c0_10, %c0_11] : memref<1x32xf32, #tpu.memory_space<vmem>>, vector<1x32xf32>
    %21 = vector.shape_cast %20 : vector<1x32xf32> to vector<1x1x32xf32>
    %22 = vector.broadcast %21 : vector<1x1x32xf32> to vector<16x5x32xf32>
    %23 = arith.addf %19, %22 : vector<16x5x32xf32>
    %cst_12 = arith.constant 0.000000e+00 : f32
    %24 = vector.broadcast %cst_12 : f32 to vector<16x5x32xf32>
    %25 = arith.cmpf ogt, %23, %24 : vector<16x5x32xf32>
    %26 = vector.broadcast %2 : f32 to vector<16x5x32xf32>
    %27 = arith.mulf %26, %23 : vector<16x5x32xf32>
    %28 = arith.select %25, %23, %27 : vector<16x5x32xi1>, vector<16x5x32xf32>
    %c0_13 = arith.constant 0 : index
    %c0_14 = arith.constant 0 : index
    %29 = vector.load %arg7[%c0_13, %c0_14] : memref<1x32xf32, #tpu.memory_space<vmem>>, vector<1x32xf32>
    %30 = vector.shape_cast %29 : vector<1x32xf32> to vector<1x1x32xf32>
    %31 = vector.broadcast %30 : vector<1x1x32xf32> to vector<16x5x32xf32>
    %32 = arith.mulf %28, %31 : vector<16x5x32xf32>
    %cst_15 = arith.constant dense<0.000000e+00> : vector<16x5xf32>
    %33 = vector.multi_reduction <add>, %32, %cst_15 [2] : vector<16x5x32xf32> to vector<16x5xf32>
    %34 = vector.shape_cast %33 : vector<16x5xf32> to vector<16x5x1xf32>
    %35 = vector.broadcast %5 : f32 to vector<16x5x1xf32>
    %36 = arith.addf %34, %35 : vector<16x5x1xf32>
    %37 = arith.negf %36 : vector<16x5x1xf32>
    %38 = math.exp %37 : vector<16x5x1xf32>
    %cst_16 = arith.constant 1.000000e+00 : f32
    %39 = vector.broadcast %cst_16 : f32 to vector<16x5x1xf32>
    %40 = arith.addf %39, %38 : vector<16x5x1xf32>
    %41 = arith.divf %39, %40 : vector<16x5x1xf32>
    %42 = arith.extf %0 : vector<16x5x48xbf16> to vector<16x5x48xf32>
    %43 = vector.broadcast %41 : vector<16x5x1xf32> to vector<16x5x48xf32>
    %44 = arith.mulf %43, %42 : vector<16x5x48xf32>
    %cst_17 = arith.constant dense<0.000000e+00> : vector<16x48xf32>
    %45 = vector.multi_reduction <add>, %44, %cst_17 [1] : vector<16x5x48xf32> to vector<16x48xf32>
    %c0_18 = arith.constant 0 : index
    %c0_19 = arith.constant 0 : index
    %46 = vector.load %arg3[%c0_18, %c0_19] : memref<16x44xbf16, #tpu.memory_space<vmem>>, vector<16x44xbf16>
    %47 = arith.truncf %45 : vector<16x48xf32> to vector<16x48xbf16>
    %48 = tpu.concatenate %46, %47, %1 in 1 : vector<16x44xbf16>, vector<16x48xbf16>, vector<16x48xbf16> -> vector<16x140xbf16>
    %c0_20 = arith.constant 0 : index
    %c0_21 = arith.constant 0 : index
    %49 = vector.load %arg8[%c0_20, %c0_21] : memref<140x128xbf16, #tpu.memory_space<vmem>>, vector<140x128xbf16>
    %cst_22 = arith.constant dense<0.000000e+00> : vector<16x128xf32>
    %50 = tpu.matmul %48, %49, %cst_22 {dimension_numbers = #tpu.dot_dimension_numbers<[1], [0], [0], [1], [0, 0, 1, 1], [], []>} : vector<16x140xbf16>, vector<140x128xbf16>, vector<16x128xf32> -> vector<16x128xf32>
    %c0_23 = arith.constant 0 : index
    %c0_24 = arith.constant 0 : index
    %51 = vector.load %arg9[%c0_23, %c0_24] : memref<1x128xf32, #tpu.memory_space<vmem>>, vector<1x128xf32>
    %52 = vector.broadcast %51 : vector<1x128xf32> to vector<16x128xf32>
    %53 = arith.addf %50, %52 : vector<16x128xf32>
    %cst_25 = arith.constant 0.000000e+00 : f32
    %54 = vector.broadcast %cst_25 : f32 to vector<16x128xf32>
    %55 = arith.cmpf ogt, %53, %54 : vector<16x128xf32>
    %56 = vector.broadcast %3 : f32 to vector<16x128xf32>
    %57 = arith.mulf %56, %53 : vector<16x128xf32>
    %58 = arith.select %55, %53, %57 : vector<16x128xi1>, vector<16x128xf32>
    %59 = arith.truncf %58 : vector<16x128xf32> to vector<16x128xbf16>
    %c0_26 = arith.constant 0 : index
    %c0_27 = arith.constant 0 : index
    %60 = vector.load %arg10[%c0_26, %c0_27] : memref<128x64xbf16, #tpu.memory_space<vmem>>, vector<128x64xbf16>
    %cst_28 = arith.constant dense<0.000000e+00> : vector<16x64xf32>
    %61 = tpu.matmul %59, %60, %cst_28 {dimension_numbers = #tpu.dot_dimension_numbers<[1], [0], [0], [1], [0, 0, 1, 1], [], []>} : vector<16x128xbf16>, vector<128x64xbf16>, vector<16x64xf32> -> vector<16x64xf32>
    %c0_29 = arith.constant 0 : index
    %c0_30 = arith.constant 0 : index
    %62 = vector.load %arg11[%c0_29, %c0_30] : memref<1x64xf32, #tpu.memory_space<vmem>>, vector<1x64xf32>
    %63 = vector.broadcast %62 : vector<1x64xf32> to vector<16x64xf32>
    %64 = arith.addf %61, %63 : vector<16x64xf32>
    %cst_31 = arith.constant 0.000000e+00 : f32
    %65 = vector.broadcast %cst_31 : f32 to vector<16x64xf32>
    %66 = arith.cmpf ogt, %64, %65 : vector<16x64xf32>
    %67 = vector.broadcast %4 : f32 to vector<16x64xf32>
    %68 = arith.mulf %67, %64 : vector<16x64xf32>
    %69 = arith.select %66, %64, %68 : vector<16x64xi1>, vector<16x64xf32>
    %c0_32 = arith.constant 0 : index
    %c0_33 = arith.constant 0 : index
    %70 = vector.load %arg12[%c0_32, %c0_33] : memref<1x64xf32, #tpu.memory_space<vmem>>, vector<1x64xf32>
    %71 = vector.broadcast %70 : vector<1x64xf32> to vector<16x64xf32>
    %72 = arith.mulf %69, %71 : vector<16x64xf32>
    %cst_34 = arith.constant dense<0.000000e+00> : vector<16xf32>
    %73 = vector.multi_reduction <add>, %72, %cst_34 [1] : vector<16x64xf32> to vector<16xf32>
    %74 = vector.shape_cast %73 : vector<16xf32> to vector<16x1xf32>
    %75 = vector.broadcast %6 : f32 to vector<16x1xf32>
    %76 = arith.addf %74, %75 : vector<16x1xf32>
    %77 = arith.negf %76 : vector<16x1xf32>
    %78 = math.exp %77 : vector<16x1xf32>
    %cst_35 = arith.constant 1.000000e+00 : f32
    %79 = vector.broadcast %cst_35 : f32 to vector<16x1xf32>
    %80 = arith.addf %79, %78 : vector<16x1xf32>
    %81 = arith.divf %79, %80 : vector<16x1xf32>
    %c0_36 = arith.constant 0 : index
    %c0_37 = arith.constant 0 : index
    %82 = vector.load %arg14[%c0_36, %c0_37] : memref<16x1xf32, #tpu.memory_space<vmem>>, vector<16x1xf32>
    tpu.vector_store %arg14[%c0_36, %c0_37], %81 {strides = array<i32>} : memref<16x1xf32, #tpu.memory_space<vmem>>, vector<16x1xf32>,
    return
  }
  func.func @transform_0(%arg0: i32) -> (i32, i32, i32) {
    %c0_i32 = arith.constant 0 : i32
    %c0_i32_0 = arith.constant 0 : i32
    %c0_i32_1 = arith.constant 0 : i32
    return %arg0, %c0_i32, %c0_i32_0 : i32, i32, i32
  }
  func.func @transform_1(%arg0: i32) -> (i32, i32) {
    %c0_i32 = arith.constant 0 : i32
    %c0_i32_0 = arith.constant 0 : i32
    return %arg0, %c0_i32 : i32, i32
  }
  func.func @transform_2(%arg0: i32) -> (i32, i32) {
    %c0_i32 = arith.constant 0 : i32
    %c0_i32_0 = arith.constant 0 : i32
    return %arg0, %c0_i32 : i32, i32
  }
  func.func @transform_3(%arg0: i32) -> (i32, i32) {
    %c0_i32 = arith.constant 0 : i32
    %c0_i32_0 = arith.constant 0 : i32
    %c0_i32_1 = arith.constant 0 : i32
    return %c0_i32, %c0_i32_0 : i32, i32
  }
  func.func @transform_4(%arg0: i32) -> (i32, i32) {
    %c0_i32 = arith.constant 0 : i32
    %c0_i32_0 = arith.constant 0 : i32
    %c0_i32_1 = arith.constant 0 : i32
    return %c0_i32, %c0_i32_0 : i32, i32
  }
  func.func @transform_5(%arg0: i32) -> (i32, i32) {
    %c0_i32 = arith.constant 0 : i32
    %c0_i32_0 = arith.constant 0 : i32
    %c0_i32_1 = arith.constant 0 : i32
    return %c0_i32, %c0_i32_0 : i32, i32
  }
  func.func @transform_6(%arg0: i32) -> (i32, i32) {
    %c0_i32 = arith.constant 0 : i32
    %c0_i32_0 = arith.constant 0 : i32
    %c0_i32_1 = arith.constant 0 : i32
    return %c0_i32, %c0_i32_0 : i32, i32
  }
  func.func @transform_7(%arg0: i32) -> (i32, i32) {
    %c0_i32 = arith.constant 0 : i32
    %c0_i32_0 = arith.constant 0 : i32
    %c0_i32_1 = arith.constant 0 : i32
    return %c0_i32, %c0_i32_0 : i32, i32
  }
  func.func @transform_8(%arg0: i32) -> (i32, i32) {
    %c0_i32 = arith.constant 0 : i32
    %c0_i32_0 = arith.constant 0 : i32
    %c0_i32_1 = arith.constant 0 : i32
    return %c0_i32, %c0_i32_0 : i32, i32
  }
  func.func @transform_9(%arg0: i32) -> (i32, i32) {
    %c0_i32 = arith.constant 0 : i32
    %c0_i32_0 = arith.constant 0 : i32
    %c0_i32_1 = arith.constant 0 : i32
    return %c0_i32, %c0_i32_0 : i32, i32
  }
  func.func @transform_10(%arg0: i32) -> (i32, i32) {
    %c0_i32 = arith.constant 0 : i32
    %c0_i32_0 = arith.constant 0 : i32
    %c0_i32_1 = arith.constant 0 : i32
    return %c0_i32, %c0_i32_0 : i32, i32
  }
  func.func @transform_11(%arg0: i32) -> (i32, i32) {
    %c0_i32 = arith.constant 0 : i32
    %c0_i32_0 = arith.constant 0 : i32
    %c0_i32_1 = arith.constant 0 : i32
    return %c0_i32, %c0_i32_0 : i32, i32
  }
  func.func @transform_12(%arg0: i32) -> i32 {
    %c0_i32 = arith.constant 0 : i32
    %c0_i32_0 = arith.constant 0 : i32
    return %c0_i32 : i32
  }
  func.func @transform_13(%arg0: i32) -> (i32, i32) {
    %c0_i32 = arith.constant 0 : i32
    %c0_i32_0 = arith.constant 0 : i32
    return %arg0, %c0_i32 : i32, i32
  }
}

</mosaic_0001>

<llo_original>
// kernel: tpu_custom_call.1
$region0: #{tpu_custom_call.1}
  #allocation0 [shape = 'u32[]', space=smem, size = 0x4, offset = 0x4, fixed_abs, tag = 'smem constant byte address 0x4 - core index']
  #allocation1 [shape = 'u32[72,128]{1,0:T(1,128)}', space=vmem, size = 0x9000, scoped, tag = 'internal scratch']
  %s0 = inlined_call_operand.vmem [shape: bf16[48,5,48], index: 0, kind: input, shape index: {}]
  %s1 = inlined_call_operand.vmem [shape: bf16[48,48], index: 1, kind: input, shape index: {}]
  %s2 = inlined_call_operand.vmem [shape: bf16[48,44], index: 2, kind: input, shape index: {}]
  %s3 = inlined_call_operand.vmem [shape: bf16[96,32], index: 3, kind: input, shape index: {}]
  %s4 = inlined_call_operand.vmem [shape: bf16[48,32], index: 4, kind: input, shape index: {}]
  %s5 = inlined_call_operand.vmem [shape: f32[1,32], index: 5, kind: input, shape index: {}]
  %s6 = inlined_call_operand.vmem [shape: f32[1,32], index: 6, kind: input, shape index: {}]
  %s7 = inlined_call_operand.vmem [shape: bf16[140,128], index: 7, kind: input, shape index: {}]
  %s8 = inlined_call_operand.vmem [shape: f32[1,128], index: 8, kind: input, shape index: {}]
  %s9 = inlined_call_operand.vmem [shape: bf16[128,64], index: 9, kind: input, shape index: {}]
  %s10 = inlined_call_operand.vmem [shape: f32[1,64], index: 10, kind: input, shape index: {}]
  %s11 = inlined_call_operand.vmem [shape: f32[1,64], index: 11, kind: input, shape index: {}]
  %s12 = inlined_call_operand.vmem [shape: f32[5], index: 12, kind: input, shape index: {}]
  %s13 = inlined_call_operand.vmem [shape: f32[48,1], index: 13, kind: output, shape index: {}]
  %s14 = sld [smem:[#allocation0]]
  $region89: #{tpu_custom_call.1} parent=0
    _
  %s16 = ssub.s32 1, %s14
  %s17 = scalar_select 0, %s16, %s14
  $region1: #{tpu_custom_call.1} parent=0
    #allocation2 [shape = 'u8[512]{0}', space=smem, size = 0x200, scoped, tag = 'input window, operand 12, single buffered']
    #allocation3 [shape = 's32[2]{0}', space=sflag, size = 0x8, scoped, tag = 'scoped memory for tpu_custom_call.1']
    %18 = vsyncpa [#allocation3], 0
    loop: start=0, step=1, limit=5
    $region2: #{tpu_custom_call.1} parent=1 // loop_pre_header
      _
    $region3: #{tpu_custom_call.1} parent=1 // loop_header
      %s20 = sphi 0, %s24
      %p21 = scmp.ge.s32.totalorder %s20, 5
      %s30 = sphi 0, %s32
      %s33 = sphi 0, %s30
      %s34 = sphi 0, %s33
      %s50 = sphi 0, %s34
      %s56 = sphi 0, %s58
      %s59 = sphi 0, %s56
      %s60 = sphi 0, %s59
      %s76 = sphi 0, %s60
      %s82 = sphi 0, %s84
      %s85 = sphi 0, %s82
      %s86 = sphi 0, %s85
      %s102 = sphi 0, %s86
      %s106 = sphi 0, %s106
      %s108 = sphi 0, %s106
      %s109 = sphi 0, %s108
      %s123 = sphi 0, %s109
      %s127 = sphi 0, %s127
      %s129 = sphi 0, %s127
      %s130 = sphi 0, %s129
      %s144 = sphi 0, %s130
      %s148 = sphi 0, %s148
      %s150 = sphi 0, %s148
      %s151 = sphi 0, %s150
      %s165 = sphi 0, %s151
      %s169 = sphi 0, %s169
      %s171 = sphi 0, %s169
      %s172 = sphi 0, %s171
      %s186 = sphi 0, %s172
      %s190 = sphi 0, %s190
      %s192 = sphi 0, %s190
      %s193 = sphi 0, %s192
      %s207 = sphi 0, %s193
      %s211 = sphi 0, %s211
      %s213 = sphi 0, %s211
      %s214 = sphi 0, %s213
      %s228 = sphi 0, %s214
      %s232 = sphi 0, %s232
      %s234 = sphi 0, %s232
      %s235 = sphi 0, %s234
      %s249 = sphi 0, %s235
      %s253 = sphi 0, %s253
      %s255 = sphi 0, %s253
      %s256 = sphi 0, %s255
      %s270 = sphi 0, %s256
      %s274 = sphi 0, %s274
      %s276 = sphi 0, %s274
      %s277 = sphi 0, %s276
      %s291 = sphi 0, %s277
      %s295 = sphi 0, %s295
      %s297 = sphi 0, %s295
      %s298 = sphi 0, %s297
      %s312 = sphi 0, %s298
      %s318 = sphi 0, %s320
      %s321 = sphi 0, %s318
      %s322 = sphi 0, %s321
      %s338 = sphi 0, %s322
    $region4: #{tpu_custom_call.1} parent=1 // loop_header_branch
      %23 = sbr.rel (%p21) target = $region8
    $region5: #{tpu_custom_call.1} parent=1 // loop_body
      %s25 = ssub.s32 %s20, 1
      %s26 = ssub.s32 %s20, 2
      %s27 = sadd.s32 %s20, 1
      %s28 = ssub.s32 %s20, %s27
      %p29 = scmp.eq.s32.totalorder %s28, 0
      %s31 = sadd.s32 %s30, 1
      %s32 = scalar_select %p29, %s30, %s31
      %p35 = pneg %p29
      %p36 = scmp.eq.s32.totalorder %s20, 2
      %p37 = por %p35, %p36
      %p38 = scmp.ne.s32.totalorder %s30, %s33
      %p39 = scmp.eq.s32.totalorder %s20, 0
      %p40 = por %p38, %p39
      %p41 = scmp.ne.s32.totalorder %s30, %s33
      %p42 = scmp.eq.s32.totalorder %s25, 2
      %p43 = por %p41, %p42
      %p44 = scmp.ne.s32.totalorder %s33, %s34
      %p45 = scmp.eq.s32.totalorder %s25, 0
      %p46 = por %p44, %p45
      %p47 = scmp.ne.s32.totalorder %s33, %s34
      %p48 = scmp.eq.s32.totalorder %s26, 2
      %p49 = por %p47, %p48
      %p51 = scmp.ne.s32.totalorder %s34, %s50
      %p52 = scmp.eq.s32.totalorder %s26, 0
      %p53 = por %p51, %p52
      %s54 = ssub.s32 %s20, %s27
      %p55 = scmp.eq.s32.totalorder %s54, 0
      %s57 = sadd.s32 %s56, 1
      %s58 = scalar_select %p55, %s56, %s57
      %p61 = pneg %p55
      %p62 = scmp.eq.s32.totalorder %s20, 2
      %p63 = por %p61, %p62
      %p64 = scmp.ne.s32.totalorder %s56, %s59
      %p65 = scmp.eq.s32.totalorder %s20, 0
      %p66 = por %p64, %p65
      %p67 = scmp.ne.s32.totalorder %s56, %s59
      %p68 = scmp.eq.s32.totalorder %s25, 2
      %p69 = por %p67, %p68
      %p70 = scmp.ne.s32.totalorder %s59, %s60
      %p71 = scmp.eq.s32.totalorder %s25, 0
      %p72 = por %p70, %p71
      %p73 = scmp.ne.s32.totalorder %s59, %s60
      %p74 = scmp.eq.s32.totalorder %s26, 2
      %p75 = por %p73, %p74
      %p77 = scmp.ne.s32.totalorder %s60, %s76
      %p78 = scmp.eq.s32.totalorder %s26, 0
      %p79 = por %p77, %p78
      %s80 = ssub.s32 %s20, %s27
      %p81 = scmp.eq.s32.totalorder %s80, 0
      %s83 = sadd.s32 %s82, 1
      %s84 = scalar_select %p81, %s82, %s83
      %p87 = pneg %p81
      %p88 = scmp.eq.s32.totalorder %s20, 2
      %p89 = por %p87, %p88
      %p90 = scmp.ne.s32.totalorder %s82, %s85
      %p91 = scmp.eq.s32.totalorder %s20, 0
      %p92 = por %p90, %p91
      %p93 = scmp.ne.s32.totalorder %s82, %s85
      %p94 = scmp.eq.s32.totalorder %s25, 2
      %p95 = por %p93, %p94
      %p96 = scmp.ne.s32.totalorder %s85, %s86
      %p97 = scmp.eq.s32.totalorder %s25, 0
      %p98 = por %p96, %p97
      %p99 = scmp.ne.s32.totalorder %s85, %s86
      %p100 = scmp.eq.s32.totalorder %s26, 2
      %p101 = por %p99, %p100
      %p103 = scmp.ne.s32.totalorder %s86, %s102
      %p104 = scmp.eq.s32.totalorder %s26, 0
      %p105 = por %p103, %p104
      %s107 = sadd.s32 %s106, 1
      %p110 = scmp.eq.s32.totalorder %s20, 2
      %p111 = scmp.ne.s32.totalorder %s106, %s108
      %p112 = scmp.eq.s32.totalorder %s20, 0
      %p113 = por %p111, %p112
      %p114 = scmp.ne.s32.totalorder %s106, %s108
      %p115 = scmp.eq.s32.totalorder %s25, 2
      %p116 = por %p114, %p115
      %p117 = scmp.ne.s32.totalorder %s108, %s109
      %p118 = scmp.eq.s32.totalorder %s25, 0
      %p119 = por %p117, %p118
      %p120 = scmp.ne.s32.totalorder %s108, %s109
      %p121 = scmp.eq.s32.totalorder %s26, 2
      %p122 = por %p120, %p121
      %p124 = scmp.ne.s32.totalorder %s109, %s123
      %p125 = scmp.eq.s32.totalorder %s26, 0
      %p126 = por %p124, %p125
      %s128 = sadd.s32 %s127, 1
      %p131 = scmp.eq.s32.totalorder %s20, 2
      %p132 = scmp.ne.s32.totalorder %s127, %s129
      %p133 = scmp.eq.s32.totalorder %s20, 0
      %p134 = por %p132, %p133
      %p135 = scmp.ne.s32.totalorder %s127, %s129
      %p136 = scmp.eq.s32.totalorder %s25, 2
      %p137 = por %p135, %p136
      %p138 = scmp.ne.s32.totalorder %s129, %s130
      %p139 = scmp.eq.s32.totalorder %s25, 0
      %p140 = por %p138, %p139
      %p141 = scmp.ne.s32.totalorder %s129, %s130
      %p142 = scmp.eq.s32.totalorder %s26, 2
      %p143 = por %p141, %p142
      %p145 = scmp.ne.s32.totalorder %s130, %s144
      %p146 = scmp.eq.s32.totalorder %s26, 0
      %p147 = por %p145, %p146
      %s149 = sadd.s32 %s148, 1
      %p152 = scmp.eq.s32.totalorder %s20, 2
      %p153 = scmp.ne.s32.totalorder %s148, %s150
      %p154 = scmp.eq.s32.totalorder %s20, 0
      %p155 = por %p153, %p154
      %p156 = scmp.ne.s32.totalorder %s148, %s150
      %p157 = scmp.eq.s32.totalorder %s25, 2
      %p158 = por %p156, %p157
      %p159 = scmp.ne.s32.totalorder %s150, %s151
      %p160 = scmp.eq.s32.totalorder %s25, 0
      %p161 = por %p159, %p160
      %p162 = scmp.ne.s32.totalorder %s150, %s151
      %p163 = scmp.eq.s32.totalorder %s26, 2
      %p164 = por %p162, %p163
      %p166 = scmp.ne.s32.totalorder %s151, %s165
      %p167 = scmp.eq.s32.totalorder %s26, 0
      %p168 = por %p166, %p167
      %s170 = sadd.s32 %s169, 1
      %p173 = scmp.eq.s32.totalorder %s20, 2
      %p174 = scmp.ne.s32.totalorder %s169, %s171
      %p175 = scmp.eq.s32.totalorder %s20, 0
      %p176 = por %p174, %p175
      %p177 = scmp.ne.s32.totalorder %s169, %s171
      %p178 = scmp.eq.s32.totalorder %s25, 2
      %p179 = por %p177, %p178
      %p180 = scmp.ne.s32.totalorder %s171, %s172
      %p181 = scmp.eq.s32.totalorder %s25, 0
      %p182 = por %p180, %p181
      %p183 = scmp.ne.s32.totalorder %s171, %s172
      %p184 = scmp.eq.s32.totalorder %s26, 2
      %p185 = por %p183, %p184
      %p187 = scmp.ne.s32.totalorder %s172, %s186
      %p188 = scmp.eq.s32.totalorder %s26, 0
      %p189 = por %p187, %p188
      %s191 = sadd.s32 %s190, 1
      %p194 = scmp.eq.s32.totalorder %s20, 2
      %p195 = scmp.ne.s32.totalorder %s190, %s192
      %p196 = scmp.eq.s32.totalorder %s20, 0
      %p197 = por %p195, %p196
      %p198 = scmp.ne.s32.totalorder %s190, %s192
      %p199 = scmp.eq.s32.totalorder %s25, 2
      %p200 = por %p198, %p199
      %p201 = scmp.ne.s32.totalorder %s192, %s193
      %p202 = scmp.eq.s32.totalorder %s25, 0
      %p203 = por %p201, %p202
      %p204 = scmp.ne.s32.totalorder %s192, %s193
      %p205 = scmp.eq.s32.totalorder %s26, 2
      %p206 = por %p204, %p205
      %p208 = scmp.ne.s32.totalorder %s193, %s207
      %p209 = scmp.eq.s32.totalorder %s26, 0
      %p210 = por %p208, %p209
      %s212 = sadd.s32 %s211, 1
      %p215 = scmp.eq.s32.totalorder %s20, 2
      %p216 = scmp.ne.s32.totalorder %s211, %s213
      %p217 = scmp.eq.s32.totalorder %s20, 0
      %p218 = por %p216, %p217
      %p219 = scmp.ne.s32.totalorder %s211, %s213
      %p220 = scmp.eq.s32.totalorder %s25, 2
      %p221 = por %p219, %p220
      %p222 = scmp.ne.s32.totalorder %s213, %s214
      %p223 = scmp.eq.s32.totalorder %s25, 0
      %p224 = por %p222, %p223
      %p225 = scmp.ne.s32.totalorder %s213, %s214
      %p226 = scmp.eq.s32.totalorder %s26, 2
      %p227 = por %p225, %p226
      %p229 = scmp.ne.s32.totalorder %s214, %s228
      %p230 = scmp.eq.s32.totalorder %s26, 0
      %p231 = por %p229, %p230
      %s233 = sadd.s32 %s232, 1
      %p236 = scmp.eq.s32.totalorder %s20, 2
      %p237 = scmp.ne.s32.totalorder %s232, %s234
      %p238 = scmp.eq.s32.totalorder %s20, 0
      %p239 = por %p237, %p238
      %p240 = scmp.ne.s32.totalorder %s232, %s234
      %p241 = scmp.eq.s32.totalorder %s25, 2
      %p242 = por %p240, %p241
      %p243 = scmp.ne.s32.totalorder %s234, %s235
      %p244 = scmp.eq.s32.totalorder %s25, 0
      %p245 = por %p243, %p244
      %p246 = scmp.ne.s32.totalorder %s234, %s235
      %p247 = scmp.eq.s32.totalorder %s26, 2
      %p248 = por %p246, %p247
      %p250 = scmp.ne.s32.totalorder %s235, %s249
      %p251 = scmp.eq.s32.totalorder %s26, 0
      %p252 = por %p250, %p251
      %s254 = sadd.s32 %s253, 1
      %p257 = scmp.eq.s32.totalorder %s20, 2
      %p258 = scmp.ne.s32.totalorder %s253, %s255
      %p259 = scmp.eq.s32.totalorder %s20, 0
      %p260 = por %p258, %p259
      %p261 = scmp.ne.s32.totalorder %s253, %s255
      %p262 = scmp.eq.s32.totalorder %s25, 2
      %p263 = por %p261, %p262
      %p264 = scmp.ne.s32.totalorder %s255, %s256
      %p265 = scmp.eq.s32.totalorder %s25, 0
      %p266 = por %p264, %p265
      %p267 = scmp.ne.s32.totalorder %s255, %s256
      %p268 = scmp.eq.s32.totalorder %s26, 2
      %p269 = por %p267, %p268
      %p271 = scmp.ne.s32.totalorder %s256, %s270
      %p272 = scmp.eq.s32.totalorder %s26, 0
      %p273 = por %p271, %p272
      %s275 = sadd.s32 %s274, 1
      %p278 = scmp.eq.s32.totalorder %s20, 2
      %p279 = scmp.ne.s32.totalorder %s274, %s276
      %p280 = scmp.eq.s32.totalorder %s20, 0
      %p281 = por %p279, %p280
      %p282 = scmp.ne.s32.totalorder %s274, %s276
      %p283 = scmp.eq.s32.totalorder %s25, 2
      %p284 = por %p282, %p283
      %p285 = scmp.ne.s32.totalorder %s276, %s277
      %p286 = scmp.eq.s32.totalorder %s25, 0
      %p287 = por %p285, %p286
      %p288 = scmp.ne.s32.totalorder %s276, %s277
      %p289 = scmp.eq.s32.totalorder %s26, 2
      %p290 = por %p288, %p289
      %p292 = scmp.ne.s32.totalorder %s277, %s291
      %p293 = scmp.eq.s32.totalorder %s26, 0
      %p294 = por %p292, %p293
      %s296 = sadd.s32 %s295, 1
      %p299 = scmp.eq.s32.totalorder %s20, 2
      %p300 = scmp.ne.s32.totalorder %s295, %s297
      %p301 = scmp.eq.s32.totalorder %s20, 0
      %p302 = por %p300, %p301
      %p303 = scmp.ne.s32.totalorder %s295, %s297
      %p304 = scmp.eq.s32.totalorder %s25, 2
      %p305 = por %p303, %p304
      %p306 = scmp.ne.s32.totalorder %s297, %s298
      %p307 = scmp.eq.s32.totalorder %s25, 0
      %p308 = por %p306, %p307
      %p309 = scmp.ne.s32.totalorder %s297, %s298
      %p310 = scmp.eq.s32.totalorder %s26, 2
      %p311 = por %p309, %p310
      %p313 = scmp.ne.s32.totalorder %s298, %s312
      %p314 = scmp.eq.s32.totalorder %s26, 0
      %p315 = por %p313, %p314
      %s316 = ssub.s32 %s20, %s27
      %p317 = scmp.eq.s32.totalorder %s316, 0
      %s319 = sadd.s32 %s318, 1
      %s320 = scalar_select %p317, %s318, %s319
      %p323 = pneg %p317
      %p324 = scmp.eq.s32.totalorder %s20, 2
      %p325 = por %p323, %p324
      %p326 = scmp.ne.s32.totalorder %s318, %s321
      %p327 = scmp.eq.s32.totalorder %s20, 0
      %p328 = por %p326, %p327
      %p329 = scmp.ne.s32.totalorder %s318, %s321
      %p330 = scmp.eq.s32.totalorder %s25, 2
      %p331 = por %p329, %p330
      %p332 = scmp.ne.s32.totalorder %s321, %s322
      %p333 = scmp.eq.s32.totalorder %s25, 0
      %p334 = por %p332, %p333
      %p335 = scmp.ne.s32.totalorder %s321, %s322
      %p336 = scmp.eq.s32.totalorder %s26, 2
      %p337 = por %p335, %p336
      %p339 = scmp.ne.s32.totalorder %s322, %s338
      %p340 = scmp.eq.s32.totalorder %s26, 0
      %p341 = por %p339, %p340
      %p342 = scmp.le.s32.totalorder 1, %s20
      %p343 = scmp.lt.s32.totalorder %s20, 4
      %p344 = pnand %p342, %p343
      %p345 = pneg %p344
      // Predicated region
      $region9: #{tpu_custom_call.1} parent=5 // pred_check
        _
      $region10: #{tpu_custom_call.1} parent=5 // pred_check_branch
        %347 = sbr.rel (%p344) target = $region12
      $region11: #{tpu_custom_call.1} parent=5 // pred_region
        %s348 = ssub.s32 %s20, 1
        // Predicated region
        $region13: #{tpu_custom_call.1} parent=11 // pred_check
          %p349 = pneg %p119
        $region14: #{tpu_custom_call.1} parent=11 // pred_check_branch
          %351 = sbr.rel (%p349) target = $region16
        $region15: #{tpu_custom_call.1} parent=11 // pred_region
          _
        $region16: #{tpu_custom_call.1} parent=11 // pred_fallthru
          _
        // Predicated region
        $region17: #{tpu_custom_call.1} parent=11 // pred_check
          %p352 = pneg %p140
        $region18: #{tpu_custom_call.1} parent=11 // pred_check_branch
          %354 = sbr.rel (%p352) target = $region20
        $region19: #{tpu_custom_call.1} parent=11 // pred_region
          _
        $region20: #{tpu_custom_call.1} parent=11 // pred_fallthru
          _
        // Predicated region
        $region21: #{tpu_custom_call.1} parent=11 // pred_check
          %p355 = pneg %p161
        $region22: #{tpu_custom_call.1} parent=11 // pred_check_branch
          %357 = sbr.rel (%p355) target = $region24
        $region23: #{tpu_custom_call.1} parent=11 // pred_region
          _
        $region24: #{tpu_custom_call.1} parent=11 // pred_fallthru
          _
        // Predicated region
        $region25: #{tpu_custom_call.1} parent=11 // pred_check
          %p358 = pneg %p182
        $region26: #{tpu_custom_call.1} parent=11 // pred_check_branch
          %360 = sbr.rel (%p358) target = $region28
        $region27: #{tpu_custom_call.1} parent=11 // pred_region
          _
        $region28: #{tpu_custom_call.1} parent=11 // pred_fallthru
          _
        // Predicated region
        $region29: #{tpu_custom_call.1} parent=11 // pred_check
          %p361 = pneg %p203
        $region30: #{tpu_custom_call.1} parent=11 // pred_check_branch
          %363 = sbr.rel (%p361) target = $region32
        $region31: #{tpu_custom_call.1} parent=11 // pred_region
          _
        $region32: #{tpu_custom_call.1} parent=11 // pred_fallthru
          _
        // Predicated region
        $region33: #{tpu_custom_call.1} parent=11 // pred_check
          %p364 = pneg %p224
        $region34: #{tpu_custom_call.1} parent=11 // pred_check_branch
          %366 = sbr.rel (%p364) target = $region36
        $region35: #{tpu_custom_call.1} parent=11 // pred_region
          _
        $region36: #{tpu_custom_call.1} parent=11 // pred_fallthru
          _
        // Predicated region
        $region37: #{tpu_custom_call.1} parent=11 // pred_check
          %p367 = pneg %p245
        $region38: #{tpu_custom_call.1} parent=11 // pred_check_branch
          %369 = sbr.rel (%p367) target = $region40
        $region39: #{tpu_custom_call.1} parent=11 // pred_region
          _
        $region40: #{tpu_custom_call.1} parent=11 // pred_fallthru
          _
        // Predicated region
        $region41: #{tpu_custom_call.1} parent=11 // pred_check
          %p370 = pneg %p266
        $region42: #{tpu_custom_call.1} parent=11 // pred_check_branch
          %372 = sbr.rel (%p370) target = $region44
        $region43: #{tpu_custom_call.1} parent=11 // pred_region
          _
        $region44: #{tpu_custom_call.1} parent=11 // pred_fallthru
          _
        // Predicated region
        $region45: #{tpu_custom_call.1} parent=11 // pred_check
          %p373 = pneg %p287
        $region46: #{tpu_custom_call.1} parent=11 // pred_check_branch
          %375 = sbr.rel (%p373) target = $region48
        $region47: #{tpu_custom_call.1} parent=11 // pred_region
          _
        $region48: #{tpu_custom_call.1} parent=11 // pred_fallthru
          _
        // Predicated region
        $region49: #{tpu_custom_call.1} parent=11 // pred_check
          %p376 = pneg %p308
        $region50: #{tpu_custom_call.1} parent=11 // pred_check_branch
          %378 = sbr.rel (%p376) target = $region52
        $region51: #{tpu_custom_call.1} parent=11 // pred_region
          %380 = vsyncadd [#allocation3], 0
          %s382 = sshll.u32 %s12, 4
          %s383 = int_to_ptr.vmem [resolvable:$true] %s382
          %385 = dma.vmem_to_smem %s383, 16, [#allocation2], [#allocation3]
        $region52: #{tpu_custom_call.1} parent=11 // pred_fallthru
          _
      $region12: #{tpu_custom_call.1} parent=5 // pred_fallthru
        _
      %p386 = scmp.lt.s32.totalorder %s20, 3
      // Predicated region
      $region53: #{tpu_custom_call.1} parent=5 // pred_check
        %p387 = pneg %p386
      $region54: #{tpu_custom_call.1} parent=5 // pred_check_branch
        %389 = sbr.rel (%p387) target = $region56
      $region55: #{tpu_custom_call.1} parent=5 // pred_region
        // Predicated region
        $region57: #{tpu_custom_call.1} parent=55 // pred_check
          %p390 = pneg %p40
        $region58: #{tpu_custom_call.1} parent=55 // pred_check_branch
          %392 = sbr.rel (%p390) target = $region60
        $region59: #{tpu_custom_call.1} parent=55 // pred_region
          %s393 = smul.u32 16, %s20
          %p394 = scmp.lt.s32.totalorder %s393, 47
          %s395 = scalar_select %p394, %s393, 47
          %s396 = smul.addr %s395, 4
          %s397 = scalar_lea.vmem %s0, %s396
          %s398 = smul.u32 16, %s20
        $region60: #{tpu_custom_call.1} parent=55 // pred_fallthru
          _
        // Predicated region
        $region61: #{tpu_custom_call.1} parent=55 // pred_check
          %p399 = pneg %p66
        $region62: #{tpu_custom_call.1} parent=55 // pred_check_branch
          %401 = sbr.rel (%p399) target = $region64
        $region63: #{tpu_custom_call.1} parent=55 // pred_region
          %s402 = smul.u32 2, %s20
          %p403 = scmp.lt.s32.totalorder %s402, 5
          %s404 = scalar_select %p403, %s402, 5
          %s405 = smul.addr %s404, 4
          %s406 = scalar_lea.vmem %s1, %s405
          %s407 = smul.u32 2, %s20
        $region64: #{tpu_custom_call.1} parent=55 // pred_fallthru
          _
        // Predicated region
        $region65: #{tpu_custom_call.1} parent=55 // pred_check
          %p408 = pneg %p92
        $region66: #{tpu_custom_call.1} parent=55 // pred_check_branch
          %410 = sbr.rel (%p408) target = $region68
        $region67: #{tpu_custom_call.1} parent=55 // pred_region
          %s411 = smul.u32 2, %s20
          %p412 = scmp.lt.s32.totalorder %s411, 5
          %s413 = scalar_select %p412, %s411, 5
          %s414 = smul.addr %s413, 4
          %s415 = scalar_lea.vmem %s2, %s414
          %s416 = smul.u32 2, %s20
        $region68: #{tpu_custom_call.1} parent=55 // pred_fallthru
          _
      $region56: #{tpu_custom_call.1} parent=5 // pred_fallthru
        _
      %p417 = scmp.le.s32.totalorder 1, %s20
      %p418 = scmp.lt.s32.totalorder %s20, 4
      %p419 = pnand %p417, %p418
      %p420 = pneg %p419
      // Predicated region
      $region69: #{tpu_custom_call.1} parent=5 // pred_check
        _
      $region70: #{tpu_custom_call.1} parent=5 // pred_check_branch
        %422 = sbr.rel (%p419) target = $region72
      $region71: #{tpu_custom_call.1} parent=5 // pred_region
        %s423 = ssub.s32 %s20, 1
        // Predicated region
        $region73: #{tpu_custom_call.1} parent=71 // pred_check
          %p424 = pneg %p308
        $region74: #{tpu_custom_call.1} parent=71 // pred_check_branch
          %426 = sbr.rel (%p424) target = $region76
        $region75: #{tpu_custom_call.1} parent=71 // pred_region
          %428 = dma.done [#allocation3], 16
        $region76: #{tpu_custom_call.1} parent=71 // pred_fallthru
          _
        %429 = sfence
        %s430 = smul.u32 16, %s25
        %p431 = scmp.lt.s32.totalorder %s430, 47
        %s432 = scalar_select %p431, %s430, 47
        %s433 = smul.addr %s432, 4
        %s434 = scalar_lea.vmem %s0, %s433
        %p435 = pneg %p46
        %p436 = pneg %p43
        %s437 = smul.u32 2, %s25
        %p438 = scmp.lt.s32.totalorder %s437, 5
        %s439 = scalar_select %p438, %s437, 5
        %s440 = smul.addr %s439, 4
        %s441 = scalar_lea.vmem %s1, %s440
        %p442 = pneg %p72
        %p443 = pneg %p69
        %s444 = smul.u32 2, %s25
        %p445 = scmp.lt.s32.totalorder %s444, 5
        %s446 = scalar_select %p445, %s444, 5
        %s447 = smul.addr %s446, 4
        %s448 = scalar_lea.vmem %s2, %s447
        %p449 = pneg %p98
        %p450 = pneg %p95
        %p451 = pneg %p119
        %p452 = pneg %p116
        %p453 = pneg %p140
        %p454 = pneg %p137
        %p455 = pneg %p161
        %p456 = pneg %p158
        %p457 = pneg %p182
        %p458 = pneg %p179
        %p459 = pneg %p203
        %p460 = pneg %p200
        %p461 = pneg %p224
        %p462 = pneg %p221
        %p463 = pneg %p245
        %p464 = pneg %p242
        %p465 = pneg %p266
        %p466 = pneg %p263
        %p467 = pneg %p287
        %p468 = pneg %p284
        %p469 = pneg %p308
        %p470 = pneg %p305
        %p471 = pneg %p334
        %p472 = pneg %p331
        %s473 = smul.u32 2, %s25
        %p474 = scmp.lt.s32.totalorder %s473, 5
        %s475 = scalar_select %p474, %s473, 5
        %s476 = smul.addr %s475, 8
        %s477 = scalar_lea.vmem %s13, %s476
        %s478 = smul.u32 16, %s25
        %p479 = scmp.lt.s32.totalorder %s478, 47
        %s480 = scalar_select %p479, %s478, 47
        %s481 = smul.addr %s480, 4
        %s482 = scalar_lea.vmem %s0, %s481
        %s483 = smul.u32 16, %s25
        %s484 = smul.u32 2, %s25
        %p485 = scmp.lt.s32.totalorder %s484, 5
        %s486 = scalar_select %p485, %s484, 5
        %s487 = smul.addr %s486, 4
        %s488 = scalar_lea.vmem %s1, %s487
        %s489 = smul.u32 2, %s25
        %s490 = smul.u32 2, %s25
        %p491 = scmp.lt.s32.totalorder %s490, 5
        %s492 = scalar_select %p491, %s490, 5
        %s493 = smul.addr %s492, 4
        %s494 = scalar_lea.vmem %s2, %s493
        %s495 = smul.u32 2, %s25
        %s496 = smul.u32 2, %s25
        %p497 = scmp.lt.s32.totalorder %s496, 5
        %s498 = scalar_select %p497, %s496, 5
        %s499 = smul.addr %s498, 8
        %s500 = scalar_lea.vmem %s13, %s499
        %s501 = smul.u32 2, %s25
        %v503 = vld [vmem:[%s482] sm:$0x7]
        %v504 = vld [vmem:[%s482 + $0x4] sm:$0x7]
        %v505 = vld [vmem:[%s482 + $0x8] sm:$0x7]
        %v506 = vld [vmem:[%s482 + $0xc] sm:$0x7]
        %v507 = vld [vmem:[%s482 + $0x10] sm:$0x7]
        %v508 = vld [vmem:[%s482 + $0x14] sm:$0x7]
        %v509 = vld [vmem:[%s482 + $0x18] sm:$0x7]
        %v510 = vld [vmem:[%s482 + $0x1c] sm:$0x7]
        %v511 = vld [vmem:[%s482 + $0x20] sm:$0x7]
        %v512 = vld [vmem:[%s482 + $0x24] sm:$0x7]
        %v513 = vld [vmem:[%s482 + $0x28] sm:$0x7]
        %v514 = vld [vmem:[%s482 + $0x2c] sm:$0x7]
        %v515 = vld [vmem:[%s482 + $0x30] sm:$0x7]
        %v516 = vld [vmem:[%s482 + $0x34] sm:$0x7]
        %v517 = vld [vmem:[%s482 + $0x38] sm:$0x7]
        %v518 = vld [vmem:[%s482 + $0x3c] sm:$0x7]
        %v519 = vld [vmem:[%s488] sm:$0xf]
        %v520 = vld [vmem:[%s488 + $0x4] sm:$0xf]
        %s521 = sld [smem:[#allocation2]]
        %s522 = sld [smem:[#allocation2 + $0x1]]
        %s523 = sld [smem:[#allocation2 + $0x2]]
        %s524 = sld [smem:[#allocation2 + $0x3]]
        %s525 = sld [smem:[#allocation2 + $0x4]]
        %v528 = vrot.slane %v519, 3
        %v529 = vrot.slane %v520, 3
        %vm530 = vcmask 1040384
        %v533 = vsel %vm530, %v519, %v528
        %vm535 = vcmask 1041409
        %v536 = vsel %vm535, %v519, %v528
        %v538 = vrot.slane %v536, 1
        %vm539 = vcmask 1042434
        %v540 = vsel %vm539, %v519, %v528
        %v542 = vrot.slane %v540, 2
        %vm543 = vcmask 1043459
        %v544 = vsel %vm543, %v519, %v528
        %v546 = vrot.slane %v544, 3
        %v549 = vsel %vm530, %v520, %v529
        %v551 = vsel %vm535, %v520, %v529
        %v553 = vrot.slane %v551, 1
        %v554 = vsel %vm539, %v520, %v529
        %v556 = vrot.slane %v554, 2
        %v557 = vsel %vm543, %v520, %v529
        %v559 = vrot.slane %v557, 3
        %v560 = vunpack.i.l.s16 %v533
        %v561 = vunpack.i.h.s16 %v533
        %v562 = vunpack.i.l.s16 %v538
        %v563 = vunpack.i.h.s16 %v538
        %v564 = vunpack.i.l.s16 %v542
        %v565 = vunpack.i.h.s16 %v542
        %v566 = vunpack.i.l.s16 %v546
        %v567 = vunpack.i.h.s16 %v546
        %v568 = vunpack.i.l.s16 %v549
        %v569 = vunpack.i.h.s16 %v549
        %v570 = vunpack.i.l.s16 %v553
        %v571 = vunpack.i.h.s16 %v553
        %v572 = vunpack.i.l.s16 %v556
        %v573 = vunpack.i.h.s16 %v556
        %v574 = vunpack.i.l.s16 %v559
        %v575 = vunpack.i.h.s16 %v559
        %v576 = vpack.i.b16 %v560, %v560
        %v577 = vpack.i.b16 %v561, %v561
        %v578 = vpack.i.b16 %v562, %v562
        %v579 = vpack.i.b16 %v563, %v563
        %v580 = vpack.i.b16 %v564, %v564
        %v581 = vpack.i.b16 %v565, %v565
        %v582 = vpack.i.b16 %v566, %v566
        %v583 = vpack.i.b16 %v567, %v567
        %v584 = vpack.i.b16 %v568, %v568
        %v585 = vpack.i.b16 %v569, %v569
        %v586 = vpack.i.b16 %v570, %v570
        %v587 = vpack.i.b16 %v571, %v571
        %v588 = vpack.i.b16 %v572, %v572
        %v589 = vpack.i.b16 %v573, %v573
        %v590 = vpack.i.b16 %v574, %v574
        %v591 = vpack.i.b16 %v575, %v575
        %v592 = vperm.slane %v576, 0
        %v593 = vperm.slane %v577, 0
        %v594 = vperm.slane %v578, 0
        %v595 = vperm.slane %v579, 0
        %v596 = vperm.slane %v580, 0
        %v597 = vperm.slane %v581, 0
        %v598 = vperm.slane %v582, 0
        %v599 = vperm.slane %v583, 0
        %v600 = vperm.slane %v584, 0
        %v601 = vperm.slane %v585, 0
        %v602 = vperm.slane %v586, 0
        %v603 = vperm.slane %v587, 0
        %v604 = vperm.slane %v588, 0
        %v605 = vperm.slane %v589, 0
        %v606 = vperm.slane %v590, 0
        %v607 = vperm.slane %v591, 0
        %v609 = vpack.i.b16 %v592, %v592
        %v611 = vperm.slane %v609, 0
        %v613 = vpack.i.b16 %v593, %v593
        %v615 = vperm.slane %v613, 0
        %v617 = vpack.i.b16 %v594, %v594
        %v619 = vperm.slane %v617, 0
        %v621 = vpack.i.b16 %v595, %v595
        %v623 = vperm.slane %v621, 0
        %v625 = vpack.i.b16 %v596, %v596
        %v627 = vperm.slane %v625, 0
        %v629 = vpack.i.b16 %v597, %v597
        %v631 = vperm.slane %v629, 0
        %v633 = vpack.i.b16 %v598, %v598
        %v635 = vperm.slane %v633, 0
        %v637 = vpack.i.b16 %v599, %v599
        %v639 = vperm.slane %v637, 0
        %v641 = vpack.i.b16 %v600, %v600
        %v643 = vperm.slane %v641, 0
        %v645 = vpack.i.b16 %v601, %v601
        %v647 = vperm.slane %v645, 0
        %v649 = vpack.i.b16 %v602, %v602
        %v651 = vperm.slane %v649, 0
        %v653 = vpack.i.b16 %v603, %v603
        %v655 = vperm.slane %v653, 0
        %v657 = vpack.i.b16 %v604, %v604
        %v659 = vperm.slane %v657, 0
        %v661 = vpack.i.b16 %v605, %v605
        %v663 = vperm.slane %v661, 0
        %v665 = vpack.i.b16 %v606, %v606
        %v667 = vperm.slane %v665, 0
        %v669 = vpack.i.b16 %v607, %v607
        %v671 = vperm.slane %v669, 0
        %v672 = vunpack.c.l.bf16 %v503
        %v673 = vunpack.c.l.bf16 %v504
        %v674 = vunpack.c.l.bf16 %v505
        %v675 = vunpack.c.l.bf16 %v506
        %v676 = vunpack.c.l.bf16 %v507
        %v677 = vunpack.c.l.bf16 %v508
        %v678 = vunpack.c.l.bf16 %v509
        %v679 = vunpack.c.l.bf16 %v510
        %v680 = vunpack.c.l.bf16 %v511
        %v681 = vunpack.c.l.bf16 %v512
        %v682 = vunpack.c.l.bf16 %v513
        %v683 = vunpack.c.l.bf16 %v514
        %v684 = vunpack.c.l.bf16 %v515
        %v685 = vunpack.c.l.bf16 %v516
        %v686 = vunpack.c.l.bf16 %v517
        %v687 = vunpack.c.l.bf16 %v518
        %v688 = vunpack.c.l.bf16 %v611
        %v689 = vunpack.c.l.bf16 %v615
        %v690 = vunpack.c.l.bf16 %v619
        %v691 = vunpack.c.l.bf16 %v623
        %v692 = vunpack.c.l.bf16 %v627
        %v693 = vunpack.c.l.bf16 %v631
        %v694 = vunpack.c.l.bf16 %v635
        %v695 = vunpack.c.l.bf16 %v639
        %v696 = vunpack.c.l.bf16 %v643
        %v697 = vunpack.c.l.bf16 %v647
        %v698 = vunpack.c.l.bf16 %v651
        %v699 = vunpack.c.l.bf16 %v655
        %v700 = vunpack.c.l.bf16 %v659
        %v701 = vunpack.c.l.bf16 %v663
        %v702 = vunpack.c.l.bf16 %v667
        %v703 = vunpack.c.l.bf16 %v671
        %v704 = vmul.f32 %v672, %v688
        %v705 = vmul.f32 %v673, %v689
        %v706 = vmul.f32 %v674, %v690
        %v707 = vmul.f32 %v675, %v691
        %v708 = vmul.f32 %v676, %v692
        %v709 = vmul.f32 %v677, %v693
        %v710 = vmul.f32 %v678, %v694
        %v711 = vmul.f32 %v679, %v695
        %v712 = vmul.f32 %v680, %v696
        %v713 = vmul.f32 %v681, %v697
        %v714 = vmul.f32 %v682, %v698
        %v715 = vmul.f32 %v683, %v699
        %v716 = vmul.f32 %v684, %v700
        %v717 = vmul.f32 %v685, %v701
        %v718 = vmul.f32 %v686, %v702
        %v719 = vmul.f32 %v687, %v703
        %v720 = vpack.c.bf16 %v704, %v704
        %v721 = vpack.c.bf16 %v705, %v705
        %v722 = vpack.c.bf16 %v706, %v706
        %v723 = vpack.c.bf16 %v707, %v707
        %v724 = vpack.c.bf16 %v708, %v708
        %v725 = vpack.c.bf16 %v709, %v709
        %v726 = vpack.c.bf16 %v710, %v710
        %v727 = vpack.c.bf16 %v711, %v711
        %v728 = vpack.c.bf16 %v712, %v712
        %v729 = vpack.c.bf16 %v713, %v713
        %v730 = vpack.c.bf16 %v714, %v714
        %v731 = vpack.c.bf16 %v715, %v715
        %v732 = vpack.c.bf16 %v716, %v716
        %v733 = vpack.c.bf16 %v717, %v717
        %v734 = vpack.c.bf16 %v718, %v718
        %v735 = vpack.c.bf16 %v719, %v719
        %v752 = vunpack.c.l.b16 %v720
        %v753 = vunpack.c.l.b16 %v721
        %v754 = vunpack.c.l.b16 %v722
        %v755 = vunpack.c.l.b16 %v723
        %v756 = vunpack.c.l.b16 %v724
        %v757 = vunpack.c.l.b16 %v725
        %v758 = vunpack.c.l.b16 %v726
        %v759 = vunpack.c.l.b16 %v727
        %v760 = vunpack.c.l.b16 %v728
        %v761 = vunpack.c.l.b16 %v729
        %v762 = vunpack.c.l.b16 %v730
        %v763 = vunpack.c.l.b16 %v731
        %v764 = vunpack.c.l.b16 %v732
        %v765 = vunpack.c.l.b16 %v733
        %v766 = vunpack.c.l.b16 %v734
        %v767 = vunpack.c.l.b16 %v735
        %v768 = vpack.c.b16 %v752, %v752
        %v769 = vpack.c.b16 %v753, %v753
        %v770 = vpack.c.b16 %v754, %v754
        %v771 = vpack.c.b16 %v755, %v755
        %v772 = vpack.c.b16 %v756, %v756
        %v773 = vpack.c.b16 %v757, %v757
        %v774 = vpack.c.b16 %v758, %v758
        %v775 = vpack.c.b16 %v759, %v759
        %v776 = vpack.c.b16 %v760, %v760
        %v777 = vpack.c.b16 %v761, %v761
        %v778 = vpack.c.b16 %v762, %v762
        %v779 = vpack.c.b16 %v763, %v763
        %v780 = vpack.c.b16 %v764, %v764
        %v781 = vpack.c.b16 %v765, %v765
        %v782 = vpack.c.b16 %v766, %v766
        %v783 = vpack.c.b16 %v767, %v767
        %784 = vrot.lane.b32.xlu0 %v768, 48
        %v785 = vpop.permute.xlu0 %784
        %786 = vrot.lane.b32.xlu0 %v769, 48
        %v787 = vpop.permute.xlu0 %786
        %788 = vrot.lane.b32.xlu0 %v770, 48
        %v789 = vpop.permute.xlu0 %788
        %790 = vrot.lane.b32.xlu0 %v771, 48
        %v791 = vpop.permute.xlu0 %790
        %792 = vrot.lane.b32.xlu0 %v772, 48
        %v793 = vpop.permute.xlu0 %792
        %794 = vrot.lane.b32.xlu0 %v773, 48
        %v795 = vpop.permute.xlu0 %794
        %796 = vrot.lane.b32.xlu0 %v774, 48
        %v797 = vpop.permute.xlu0 %796
        %798 = vrot.lane.b32.xlu0 %v775, 48
        %v799 = vpop.permute.xlu0 %798
        %800 = vrot.lane.b32.xlu0 %v776, 48
        %v801 = vpop.permute.xlu0 %800
        %802 = vrot.lane.b32.xlu0 %v777, 48
        %v803 = vpop.permute.xlu0 %802
        %804 = vrot.lane.b32.xlu0 %v778, 48
        %v805 = vpop.permute.xlu0 %804
        %806 = vrot.lane.b32.xlu0 %v779, 48
        %v807 = vpop.permute.xlu0 %806
        %808 = vrot.lane.b32.xlu0 %v780, 48
        %v809 = vpop.permute.xlu0 %808
        %810 = vrot.lane.b32.xlu0 %v781, 48
        %v811 = vpop.permute.xlu0 %810
        %812 = vrot.lane.b32.xlu0 %v782, 48
        %v813 = vpop.permute.xlu0 %812
        %814 = vrot.lane.b32.xlu0 %v783, 48
        %v815 = vpop.permute.xlu0 %814
        %vm816 = vcmask 392192
        %v819 = vsel %vm816, %v503, %v785
        %v822 = vsel %vm816, %v504, %v787
        %v825 = vsel %vm816, %v505, %v789
        %v828 = vsel %vm816, %v506, %v791
        %v831 = vsel %vm816, %v507, %v793
        %v834 = vsel %vm816, %v508, %v795
        %v837 = vsel %vm816, %v509, %v797
        %v840 = vsel %vm816, %v510, %v799
        %v843 = vsel %vm816, %v511, %v801
        %v846 = vsel %vm816, %v512, %v803
        %v849 = vsel %vm816, %v513, %v805
        %v852 = vsel %vm816, %v514, %v807
        %v855 = vsel %vm816, %v515, %v809
        %v858 = vsel %vm816, %v516, %v811
        %v861 = vsel %vm816, %v517, %v813
        %v864 = vsel %vm816, %v518, %v815
        %v881 = vrot.slane %v819, 1
        %v882 = vrot.slane %v819, 2
        %v883 = vrot.slane %v822, 1
        %v884 = vrot.slane %v822, 2
        %v885 = vrot.slane %v825, 1
        %v886 = vrot.slane %v825, 2
        %v887 = vrot.slane %v828, 1
        %v888 = vrot.slane %v828, 2
        %v889 = vrot.slane %v831, 1
        %v890 = vrot.slane %v831, 2
        %v891 = vrot.slane %v834, 1
        %v892 = vrot.slane %v834, 2
        %v893 = vrot.slane %v837, 1
        %v894 = vrot.slane %v837, 2
        %v895 = vrot.slane %v840, 1
        %v896 = vrot.slane %v840, 2
        %v897 = vrot.slane %v843, 1
        %v898 = vrot.slane %v843, 2
        %v899 = vrot.slane %v846, 1
        %v900 = vrot.slane %v846, 2
        %v901 = vrot.slane %v849, 1
        %v902 = vrot.slane %v849, 2
        %v903 = vrot.slane %v852, 1
        %v904 = vrot.slane %v852, 2
        %v905 = vrot.slane %v855, 1
        %v906 = vrot.slane %v855, 2
        %v907 = vrot.slane %v858, 1
        %v908 = vrot.slane %v858, 2
        %v909 = vrot.slane %v861, 1
        %v910 = vrot.slane %v861, 2
        %v911 = vrot.slane %v864, 1
        %v912 = vrot.slane %v864, 2
        %v913 = vunpack.i.l.s16 %v819
        %v914 = vunpack.i.h.s16 %v819
        %v915 = vunpack.i.l.s16 %v881
        %v916 = vunpack.i.h.s16 %v881
        %v917 = vunpack.i.l.s16 %v882
        %v918 = vunpack.i.l.s16 %v822
        %v919 = vunpack.i.h.s16 %v822
        %v920 = vunpack.i.l.s16 %v883
        %v921 = vunpack.i.h.s16 %v883
        %v922 = vunpack.i.l.s16 %v884
        %v923 = vunpack.i.l.s16 %v825
        %v924 = vunpack.i.h.s16 %v825
        %v925 = vunpack.i.l.s16 %v885
        %v926 = vunpack.i.h.s16 %v885
        %v927 = vunpack.i.l.s16 %v886
        %v928 = vunpack.i.l.s16 %v828
        %v929 = vunpack.i.h.s16 %v828
        %v930 = vunpack.i.l.s16 %v887
        %v931 = vunpack.i.h.s16 %v887
        %v932 = vunpack.i.l.s16 %v888
        %v933 = vunpack.i.l.s16 %v831
        %v934 = vunpack.i.h.s16 %v831
        %v935 = vunpack.i.l.s16 %v889
        %v936 = vunpack.i.h.s16 %v889
        %v937 = vunpack.i.l.s16 %v890
        %v938 = vunpack.i.l.s16 %v834
        %v939 = vunpack.i.h.s16 %v834
        %v940 = vunpack.i.l.s16 %v891
        %v941 = vunpack.i.h.s16 %v891
        %v942 = vunpack.i.l.s16 %v892
        %v943 = vunpack.i.l.s16 %v837
        %v944 = vunpack.i.h.s16 %v837
        %v945 = vunpack.i.l.s16 %v893
        %v946 = vunpack.i.h.s16 %v893
        %v947 = vunpack.i.l.s16 %v894
        %v948 = vunpack.i.l.s16 %v840
        %v949 = vunpack.i.h.s16 %v840
        %v950 = vunpack.i.l.s16 %v895
        %v951 = vunpack.i.h.s16 %v895
        %v952 = vunpack.i.l.s16 %v896
        %v953 = vunpack.i.l.s16 %v843
        %v954 = vunpack.i.h.s16 %v843
        %v955 = vunpack.i.l.s16 %v897
        %v956 = vunpack.i.h.s16 %v897
        %v957 = vunpack.i.l.s16 %v898
        %v958 = vunpack.i.l.s16 %v846
        %v959 = vunpack.i.h.s16 %v846
        %v960 = vunpack.i.l.s16 %v899
        %v961 = vunpack.i.h.s16 %v899
        %v962 = vunpack.i.l.s16 %v900
        %v963 = vunpack.i.l.s16 %v849
        %v964 = vunpack.i.h.s16 %v849
        %v965 = vunpack.i.l.s16 %v901
        %v966 = vunpack.i.h.s16 %v901
        %v967 = vunpack.i.l.s16 %v902
        %v968 = vunpack.i.l.s16 %v852
        %v969 = vunpack.i.h.s16 %v852
        %v970 = vunpack.i.l.s16 %v903
        %v971 = vunpack.i.h.s16 %v903
        %v972 = vunpack.i.l.s16 %v904
        %v973 = vunpack.i.l.s16 %v855
        %v974 = vunpack.i.h.s16 %v855
        %v975 = vunpack.i.l.s16 %v905
        %v976 = vunpack.i.h.s16 %v905
        %v977 = vunpack.i.l.s16 %v906
        %v978 = vunpack.i.l.s16 %v858
        %v979 = vunpack.i.h.s16 %v858
        %v980 = vunpack.i.l.s16 %v907
        %v981 = vunpack.i.h.s16 %v907
        %v982 = vunpack.i.l.s16 %v908
        %v983 = vunpack.i.l.s16 %v861
        %v984 = vunpack.i.h.s16 %v861
        %v985 = vunpack.i.l.s16 %v909
        %v986 = vunpack.i.h.s16 %v909
        %v987 = vunpack.i.l.s16 %v910
        %v988 = vunpack.i.l.s16 %v864
        %v989 = vunpack.i.h.s16 %v864
        %v990 = vunpack.i.l.s16 %v911
        %v991 = vunpack.i.h.s16 %v911
        %v992 = vunpack.i.l.s16 %v912
        %v993 = vld [vmem:[%s3] sm:$0xf]
        %v994 = vld [vmem:[%s3 + $0x4] sm:$0xf]
        %v995 = vld [vmem:[%s3 + $0x8] sm:$0xf]
        %v996 = vld [vmem:[%s3 + $0xc] sm:$0xf]
        %v997 = vld [vmem:[%s3 + $0x10] sm:$0xf]
        %v998 = vld [vmem:[%s3 + $0x14] sm:$0xf]
        %v999 = vld [vmem:[%s3 + $0x18] sm:$0xf]
        %v1000 = vld [vmem:[%s3 + $0x1c] sm:$0xf]
        %v1001 = vld [vmem:[%s3 + $0x20] sm:$0xf]
        %v1002 = vld [vmem:[%s3 + $0x24] sm:$0xf]
        %v1003 = vld [vmem:[%s3 + $0x28] sm:$0xf]
        %v1004 = vld [vmem:[%s3 + $0x2c] sm:$0xf]
        %v1005 = vpack.i.b16 %v914, %v913
        %v1006 = vpack.i.b16 %v916, %v915
        %v1007 = vpack.i.b16 %v918, %v917
        %v1008 = vpack.i.b16 %v920, %v919
        %v1009 = vpack.i.b16 %v922, %v921
        %v1010 = vpack.i.b16 %v924, %v923
        %v1011 = vpack.i.b16 %v926, %v925
        %v1012 = vpack.i.b16 %v928, %v927
        %v1013 = vpack.i.b16 %v930, %v929
        %v1014 = vpack.i.b16 %v932, %v931
        %v1015 = vpack.i.b16 %v934, %v933
        %v1016 = vpack.i.b16 %v936, %v935
        %v1017 = vpack.i.b16 %v938, %v937
        %v1018 = vpack.i.b16 %v940, %v939
        %v1019 = vpack.i.b16 %v942, %v941
        %v1020 = vpack.i.b16 %v944, %v943
        %v1021 = vpack.i.b16 %v946, %v945
        %v1022 = vpack.i.b16 %v948, %v947
        %v1023 = vpack.i.b16 %v950, %v949
        %v1024 = vpack.i.b16 %v952, %v951
        %v1025 = vpack.i.b16 %v954, %v953
        %v1026 = vpack.i.b16 %v956, %v955
        %v1027 = vpack.i.b16 %v958, %v957
        %v1028 = vpack.i.b16 %v960, %v959
        %v1029 = vpack.i.b16 %v962, %v961
        %v1030 = vpack.i.b16 %v964, %v963
        %v1031 = vpack.i.b16 %v966, %v965
        %v1032 = vpack.i.b16 %v968, %v967
        %v1033 = vpack.i.b16 %v970, %v969
        %v1034 = vpack.i.b16 %v972, %v971
        %v1035 = vpack.i.b16 %v974, %v973
        %v1036 = vpack.i.b16 %v976, %v975
        %v1037 = vpack.i.b16 %v978, %v977
        %v1038 = vpack.i.b16 %v980, %v979
        %v1039 = vpack.i.b16 %v982, %v981
        %v1040 = vpack.i.b16 %v984, %v983
        %v1041 = vpack.i.b16 %v986, %v985
        %v1042 = vpack.i.b16 %v988, %v987
        %v1043 = vpack.i.b16 %v990, %v989
        %v1044 = vpack.i.b16 %v992, %v991
        %1046 = vst [vmem:[#allocation1] ss:$9 sm:$0xff] %v1005
        %s1048 = scalar_lea.vmem [#allocation1], 1
        %1049 = vst [vmem:[%s1048] ss:$9 sm:$0xff] %v1006
        %s1051 = scalar_lea.vmem [#allocation1], 2
        %1052 = vst [vmem:[%s1051] ss:$9 sm:$0xff] %v1007
        %s1054 = scalar_lea.vmem [#allocation1], 3
        %1055 = vst [vmem:[%s1054] ss:$9 sm:$0xff] %v1008
        %s1057 = scalar_lea.vmem [#allocation1], 4
        %1058 = vst [vmem:[%s1057] ss:$9 sm:$0xff] %v1009
        %s1060 = scalar_lea.vmem [#allocation1], 5
        %1061 = vst [vmem:[%s1060] ss:$9 sm:$0xff] %v1010
        %s1063 = scalar_lea.vmem [#allocation1], 6
        %1064 = vst [vmem:[%s1063] ss:$9 sm:$0xff] %v1011
        %s1066 = scalar_lea.vmem [#allocation1], 7
        %1067 = vst [vmem:[%s1066] ss:$9 sm:$0xff] %v1012
        %v1068 = vld [vmem:[#allocation1] sm:$0xff]
        %1070 = vst [vmem:[#allocation1] ss:$9 sm:$0xff] %v1013
        %1072 = vst [vmem:[%s1048] ss:$9 sm:$0xff] %v1014
        %1074 = vst [vmem:[%s1051] ss:$9 sm:$0xff] %v1015
        %1076 = vst [vmem:[%s1054] ss:$9 sm:$0xff] %v1016
        %1078 = vst [vmem:[%s1057] ss:$9 sm:$0xff] %v1017
        %1080 = vst [vmem:[%s1060] ss:$9 sm:$0xff] %v1018
        %1082 = vst [vmem:[%s1063] ss:$9 sm:$0xff] %v1019
        %1084 = vst [vmem:[%s1066] ss:$9 sm:$0xff] %v1020
        %v1085 = vld [vmem:[#allocation1] sm:$0xff]
        %1087 = vst [vmem:[#allocation1] ss:$9 sm:$0xff] %v1021
        %1089 = vst [vmem:[%s1048] ss:$9 sm:$0xff] %v1022
        %1091 = vst [vmem:[%s1051] ss:$9 sm:$0xff] %v1023
        %1093 = vst [vmem:[%s1054] ss:$9 sm:$0xff] %v1024
        %1095 = vst [vmem:[%s1057] ss:$9 sm:$0xff] %v1025
        %1097 = vst [vmem:[%s1060] ss:$9 sm:$0xff] %v1026
        %1099 = vst [vmem:[%s1063] ss:$9 sm:$0xff] %v1027
        %1101 = vst [vmem:[%s1066] ss:$9 sm:$0xff] %v1028
        %v1102 = vld [vmem:[#allocation1] sm:$0xff]
        %1104 = vst [vmem:[#allocation1] ss:$9 sm:$0xff] %v1029
        %1106 = vst [vmem:[%s1048] ss:$9 sm:$0xff] %v1030
        %1108 = vst [vmem:[%s1051] ss:$9 sm:$0xff] %v1031
        %1110 = vst [vmem:[%s1054] ss:$9 sm:$0xff] %v1032
        %1112 = vst [vmem:[%s1057] ss:$9 sm:$0xff] %v1033
        %1114 = vst [vmem:[%s1060] ss:$9 sm:$0xff] %v1034
        %1116 = vst [vmem:[%s1063] ss:$9 sm:$0xff] %v1035
        %1118 = vst [vmem:[%s1066] ss:$9 sm:$0xff] %v1036
        %v1119 = vld [vmem:[#allocation1] sm:$0xff]
        %1121 = vst [vmem:[#allocation1] ss:$9 sm:$0xff] %v1037
        %1123 = vst [vmem:[%s1048] ss:$9 sm:$0xff] %v1038
        %1125 = vst [vmem:[%s1051] ss:$9 sm:$0xff] %v1039
        %1127 = vst [vmem:[%s1054] ss:$9 sm:$0xff] %v1040
        %1129 = vst [vmem:[%s1057] ss:$9 sm:$0xff] %v1041
        %1131 = vst [vmem:[%s1060] ss:$9 sm:$0xff] %v1042
        %1133 = vst [vmem:[%s1063] ss:$9 sm:$0xff] %v1043
        %1135 = vst [vmem:[%s1066] ss:$9 sm:$0xff] %v1044
        %v1136 = vld [vmem:[#allocation1] sm:$0xff]
        %v1149 = vunpack.c.l.b16 %v993
        %v1150 = vunpack.c.l.b16 %v994
        %v1151 = vunpack.c.l.b16 %v995
        %v1152 = vunpack.c.l.b16 %v996
        %v1153 = vunpack.c.l.b16 %v997
        %v1154 = vunpack.c.l.b16 %v998
        %v1155 = vunpack.c.l.b16 %v999
        %v1156 = vunpack.c.l.b16 %v1000
        %v1157 = vunpack.c.l.b16 %v1001
        %v1158 = vunpack.c.l.b16 %v1002
        %v1159 = vunpack.c.l.b16 %v1003
        %v1160 = vunpack.c.l.b16 %v1004
        %v1161 = vpack.c.b16 %v1150, %v1149
        %v1162 = vpack.c.b16 %v1152, %v1151
        %v1163 = vpack.c.b16 %v1154, %v1153
        %v1164 = vpack.c.b16 %v1156, %v1155
        %v1165 = vpack.c.b16 %v1158, %v1157
        %v1166 = vpack.c.b16 %v1160, %v1159
        %vm1173 = vcmask 785408
        %v1174 = vsel %vm1173, %v1068, 0
        %v1176 = vsel %vm1173, %v1085, 0
        %v1178 = vsel %vm1173, %v1102, 0
        %v1180 = vsel %vm1173, %v1119, 0
        %v1182 = vsel %vm1173, %v1136, 0
        %1184 = vmatpush.bf16.msra.mxu0 0
        %1185 = vmatpush.bf16.msra.mxu0 0
        %1186 = vmatpush.bf16.msra.mxu0 %v1166
        %1187 = vmatpush.bf16.msra.mxu0 %v1165
        %1188 = vmatpush.bf16.msra.mxu0 %v1164
        %1189 = vmatpush.bf16.msra.mxu0 %v1163
        %1190 = vmatpush.bf16.msra.mxu0 %v1162
        %1191 = vmatpush.bf16.msra.mxu0 %v1161
        %1192 = vmatmul.bf16.gmra.mxu0 %v1174
        %v1193 = vpop.f32.mrf.mxu0
        %v1194 = vadd.f32 0.0, %v1193
        %v1195 = vpop.f32.mrf.mxu0
        %v1196 = vadd.f32 0.0, %v1195
        %1197 = vmatmul.bf16.gmra.mxu0 %v1176
        %v1198 = vpop.f32.mrf.mxu0
        %v1199 = vadd.f32 0.0, %v1198
        %v1200 = vpop.f32.mrf.mxu0
        %v1201 = vadd.f32 0.0, %v1200
        %1202 = vmatmul.bf16.gmra.mxu0 %v1178
        %v1203 = vpop.f32.mrf.mxu0
        %v1204 = vadd.f32 0.0, %v1203
        %v1205 = vpop.f32.mrf.mxu0
        %v1206 = vadd.f32 0.0, %v1205
        %1207 = vmatmul.bf16.gmra.mxu0 %v1180
        %v1208 = vpop.f32.mrf.mxu0
        %v1209 = vadd.f32 0.0, %v1208
        %v1210 = vpop.f32.mrf.mxu0
        %v1211 = vadd.f32 0.0, %v1210
        %1212 = vmatmul.bf16.gmra.mxu0 %v1182
        %v1213 = vpop.f32.mrf.mxu0
        %v1214 = vadd.f32 0.0, %v1213
        %v1215 = vpop.f32.mrf.mxu0
        %v1216 = vadd.f32 0.0, %v1215
        %1217 = vdwg.mxu0
        %v1228 = vrot.slane %v1194, 1
        %v1229 = vrot.slane %v1194, 2
        %v1230 = vrot.slane %v1194, 3
        %v1231 = vrot.slane %v1194, 4
        %v1232 = vrot.slane %v1194, 5
        %v1233 = vrot.slane %v1194, 6
        %v1234 = vrot.slane %v1194, 7
        %v1235 = vrot.slane %v1196, 1
        %v1236 = vrot.slane %v1196, 2
        %v1237 = vrot.slane %v1196, 3
        %v1238 = vrot.slane %v1196, 4
        %v1239 = vrot.slane %v1196, 5
        %v1240 = vrot.slane %v1196, 6
        %v1241 = vrot.slane %v1196, 7
        %v1242 = vrot.slane %v1199, 1
        %v1243 = vrot.slane %v1199, 2
        %v1244 = vrot.slane %v1199, 3
        %v1245 = vrot.slane %v1199, 4
        %v1246 = vrot.slane %v1199, 5
        %v1247 = vrot.slane %v1199, 6
        %v1248 = vrot.slane %v1199, 7
        %v1249 = vrot.slane %v1201, 1
        %v1250 = vrot.slane %v1201, 2
        %v1251 = vrot.slane %v1201, 3
        %v1252 = vrot.slane %v1201, 4
        %v1253 = vrot.slane %v1201, 5
        %v1254 = vrot.slane %v1201, 6
        %v1255 = vrot.slane %v1201, 7
        %v1256 = vrot.slane %v1204, 1
        %v1257 = vrot.slane %v1204, 2
        %v1258 = vrot.slane %v1204, 3
        %v1259 = vrot.slane %v1204, 4
        %v1260 = vrot.slane %v1204, 5
        %v1261 = vrot.slane %v1204, 6
        %v1262 = vrot.slane %v1204, 7
        %v1263 = vrot.slane %v1206, 1
        %v1264 = vrot.slane %v1206, 2
        %v1265 = vrot.slane %v1206, 3
        %v1266 = vrot.slane %v1206, 4
        %v1267 = vrot.slane %v1206, 5
        %v1268 = vrot.slane %v1206, 6
        %v1269 = vrot.slane %v1206, 7
        %v1270 = vrot.slane %v1209, 1
        %v1271 = vrot.slane %v1209, 2
        %v1272 = vrot.slane %v1209, 3
        %v1273 = vrot.slane %v1209, 4
        %v1274 = vrot.slane %v1209, 5
        %v1275 = vrot.slane %v1209, 6
        %v1276 = vrot.slane %v1209, 7
        %v1277 = vrot.slane %v1211, 1
        %v1278 = vrot.slane %v1211, 2
        %v1279 = vrot.slane %v1211, 3
        %v1280 = vrot.slane %v1211, 4
        %v1281 = vrot.slane %v1211, 5
        %v1282 = vrot.slane %v1211, 6
        %v1283 = vrot.slane %v1211, 7
        %v1284 = vrot.slane %v1214, 1
        %v1285 = vrot.slane %v1214, 2
        %v1286 = vrot.slane %v1214, 3
        %v1287 = vrot.slane %v1214, 4
        %v1288 = vrot.slane %v1214, 5
        %v1289 = vrot.slane %v1214, 6
        %v1290 = vrot.slane %v1214, 7
        %v1291 = vrot.slane %v1216, 1
        %v1292 = vrot.slane %v1216, 2
        %v1293 = vrot.slane %v1216, 3
        %v1294 = vrot.slane %v1216, 4
        %v1295 = vrot.slane %v1216, 5
        %v1296 = vrot.slane %v1216, 6
        %v1297 = vrot.slane %v1216, 7
        %v1368 = vld [vmem:[%s4] sm:$0xf]
        %v1369 = vld [vmem:[%s4 + $0x4] sm:$0xf]
        %v1370 = vld [vmem:[%s4 + $0x8] sm:$0xf]
        %v1371 = vld [vmem:[%s4 + $0xc] sm:$0xf]
        %v1372 = vld [vmem:[%s4 + $0x10] sm:$0xf]
        %v1373 = vld [vmem:[%s4 + $0x14] sm:$0xf]
        %v1374 = vunpack.c.l.b16 %v519
        %v1375 = vunpack.c.l.b16 %v520
        %v1376 = vpack.c.b16 %v1375, %v1374
        %v1383 = vunpack.c.l.b16 %v1368
        %v1384 = vunpack.c.l.b16 %v1369
        %v1385 = vunpack.c.l.b16 %v1370
        %v1386 = vunpack.c.l.b16 %v1371
        %v1387 = vunpack.c.l.b16 %v1372
        %v1388 = vunpack.c.l.b16 %v1373
        %v1389 = vpack.c.b16 %v1384, %v1383
        %v1390 = vpack.c.b16 %v1386, %v1385
        %v1391 = vpack.c.b16 %v1388, %v1387
        %v1396 = vsel %vm816, %v1376, 0
        %1398 = vmatpush.bf16.msra.mxu0 0
        %1399 = vmatpush.bf16.msra.mxu0 0
        %1400 = vmatpush.bf16.msra.mxu0 0
        %1401 = vmatpush.bf16.msra.mxu0 0
        %1402 = vmatpush.bf16.msra.mxu0 0
        %1403 = vmatpush.bf16.msra.mxu0 %v1391
        %1404 = vmatpush.bf16.msra.mxu0 %v1390
        %1405 = vmatpush.bf16.msra.mxu0 %v1389
        %1406 = vmatmul.bf16.gmra.mxu0 %v1396
        %v1407 = vpop.f32.mrf.mxu0
        %v1408 = vadd.f32 0.0, %v1407
        %v1409 = vpop.f32.mrf.mxu0
        %v1410 = vadd.f32 0.0, %v1409
        %1411 = vdwg.mxu0
        %v1414 = vrot.slane %v1408, 1
        %v1415 = vrot.slane %v1408, 2
        %v1416 = vrot.slane %v1408, 3
        %v1417 = vrot.slane %v1408, 4
        %v1418 = vrot.slane %v1408, 5
        %v1419 = vrot.slane %v1408, 6
        %v1420 = vrot.slane %v1408, 7
        %v1421 = vrot.slane %v1410, 1
        %v1422 = vrot.slane %v1410, 2
        %v1423 = vrot.slane %v1410, 3
        %v1424 = vrot.slane %v1410, 4
        %v1425 = vrot.slane %v1410, 5
        %v1426 = vrot.slane %v1410, 6
        %v1427 = vrot.slane %v1410, 7
        %v1428 = vperm.slane %v1408, 0
        %v1429 = vperm.slane %v1414, 0
        %v1430 = vperm.slane %v1415, 0
        %v1431 = vperm.slane %v1416, 0
        %v1432 = vperm.slane %v1417, 0
        %v1433 = vperm.slane %v1418, 0
        %v1434 = vperm.slane %v1419, 0
        %v1435 = vperm.slane %v1420, 0
        %v1436 = vperm.slane %v1410, 0
        %v1437 = vperm.slane %v1421, 0
        %v1438 = vperm.slane %v1422, 0
        %v1439 = vperm.slane %v1423, 0
        %v1440 = vperm.slane %v1424, 0
        %v1441 = vperm.slane %v1425, 0
        %v1442 = vperm.slane %v1426, 0
        %v1443 = vperm.slane %v1427, 0
        %v1460 = vrot.slane %v1428, 1
        %v1461 = vrot.slane %v1428, 2
        %v1462 = vrot.slane %v1428, 3
        %v1463 = vrot.slane %v1428, 4
        %v1464 = vrot.slane %v1429, 1
        %v1465 = vrot.slane %v1429, 2
        %v1466 = vrot.slane %v1429, 3
        %v1467 = vrot.slane %v1429, 4
        %v1468 = vrot.slane %v1430, 1
        %v1469 = vrot.slane %v1430, 2
        %v1470 = vrot.slane %v1430, 3
        %v1471 = vrot.slane %v1430, 4
        %v1472 = vrot.slane %v1431, 1
        %v1473 = vrot.slane %v1431, 2
        %v1474 = vrot.slane %v1431, 3
        %v1475 = vrot.slane %v1431, 4
        %v1476 = vrot.slane %v1432, 1
        %v1477 = vrot.slane %v1432, 2
        %v1478 = vrot.slane %v1432, 3
        %v1479 = vrot.slane %v1432, 4
        %v1480 = vrot.slane %v1433, 1
        %v1481 = vrot.slane %v1433, 2
        %v1482 = vrot.slane %v1433, 3
        %v1483 = vrot.slane %v1433, 4
        %v1484 = vrot.slane %v1434, 1
        %v1485 = vrot.slane %v1434, 2
        %v1486 = vrot.slane %v1434, 3
        %v1487 = vrot.slane %v1434, 4
        %v1488 = vrot.slane %v1435, 1
        %v1489 = vrot.slane %v1435, 2
        %v1490 = vrot.slane %v1435, 3
        %v1491 = vrot.slane %v1435, 4
        %v1492 = vrot.slane %v1436, 1
        %v1493 = vrot.slane %v1436, 2
        %v1494 = vrot.slane %v1436, 3
        %v1495 = vrot.slane %v1436, 4
        %v1496 = vrot.slane %v1437, 1
        %v1497 = vrot.slane %v1437, 2
        %v1498 = vrot.slane %v1437, 3
        %v1499 = vrot.slane %v1437, 4
        %v1500 = vrot.slane %v1438, 1
        %v1501 = vrot.slane %v1438, 2
        %v1502 = vrot.slane %v1438, 3
        %v1503 = vrot.slane %v1438, 4
        %v1504 = vrot.slane %v1439, 1
        %v1505 = vrot.slane %v1439, 2
        %v1506 = vrot.slane %v1439, 3
        %v1507 = vrot.slane %v1439, 4
        %v1508 = vrot.slane %v1440, 1
        %v1509 = vrot.slane %v1440, 2
        %v1510 = vrot.slane %v1440, 3
        %v1511 = vrot.slane %v1440, 4
        %v1512 = vrot.slane %v1441, 1
        %v1513 = vrot.slane %v1441, 2
        %v1514 = vrot.slane %v1441, 3
        %v1515 = vrot.slane %v1441, 4
        %v1516 = vrot.slane %v1442, 1
        %v1517 = vrot.slane %v1442, 2
        %v1518 = vrot.slane %v1442, 3
        %v1519 = vrot.slane %v1442, 4
        %v1520 = vrot.slane %v1443, 1
        %v1521 = vrot.slane %v1443, 2
        %v1522 = vrot.slane %v1443, 3
        %v1523 = vrot.slane %v1443, 4
        %v1588 = vadd.f32 %v1194, %v1428
        %v1589 = vadd.f32 %v1228, %v1460
        %v1590 = vadd.f32 %v1229, %v1461
        %v1591 = vadd.f32 %v1230, %v1462
        %v1592 = vadd.f32 %v1231, %v1463
        %v1593 = vadd.f32 %v1232, %v1429
        %v1594 = vadd.f32 %v1233, %v1464
        %v1595 = vadd.f32 %v1234, %v1465
        %v1596 = vadd.f32 %v1196, %v1466
        %v1597 = vadd.f32 %v1235, %v1467
        %v1598 = vadd.f32 %v1236, %v1430
        %v1599 = vadd.f32 %v1237, %v1468
        %v1600 = vadd.f32 %v1238, %v1469
        %v1601 = vadd.f32 %v1239, %v1470
        %v1602 = vadd.f32 %v1240, %v1471
        %v1603 = vadd.f32 %v1241, %v1431
        %v1604 = vadd.f32 %v1199, %v1472
        %v1605 = vadd.f32 %v1242, %v1473
        %v1606 = vadd.f32 %v1243, %v1474
        %v1607 = vadd.f32 %v1244, %v1475
        %v1608 = vadd.f32 %v1245, %v1432
        %v1609 = vadd.f32 %v1246, %v1476
        %v1610 = vadd.f32 %v1247, %v1477
        %v1611 = vadd.f32 %v1248, %v1478
        %v1612 = vadd.f32 %v1201, %v1479
        %v1613 = vadd.f32 %v1249, %v1433
        %v1614 = vadd.f32 %v1250, %v1480
        %v1615 = vadd.f32 %v1251, %v1481
        %v1616 = vadd.f32 %v1252, %v1482
        %v1617 = vadd.f32 %v1253, %v1483
        %v1618 = vadd.f32 %v1254, %v1434
        %v1619 = vadd.f32 %v1255, %v1484
        %v1620 = vadd.f32 %v1204, %v1485
        %v1621 = vadd.f32 %v1256, %v1486
        %v1622 = vadd.f32 %v1257, %v1487
        %v1623 = vadd.f32 %v1258, %v1435
        %v1624 = vadd.f32 %v1259, %v1488
        %v1625 = vadd.f32 %v1260, %v1489
        %v1626 = vadd.f32 %v1261, %v1490
        %v1627 = vadd.f32 %v1262, %v1491
        %v1628 = vadd.f32 %v1206, %v1436
        %v1629 = vadd.f32 %v1263, %v1492
        %v1630 = vadd.f32 %v1264, %v1493
        %v1631 = vadd.f32 %v1265, %v1494
        %v1632 = vadd.f32 %v1266, %v1495
        %v1633 = vadd.f32 %v1267, %v1437
        %v1634 = vadd.f32 %v1268, %v1496
        %v1635 = vadd.f32 %v1269, %v1497
        %v1636 = vadd.f32 %v1209, %v1498
        %v1637 = vadd.f32 %v1270, %v1499
        %v1638 = vadd.f32 %v1271, %v1438
        %v1639 = vadd.f32 %v1272, %v1500
        %v1640 = vadd.f32 %v1273, %v1501
        %v1641 = vadd.f32 %v1274, %v1502
        %v1642 = vadd.f32 %v1275, %v1503
        %v1643 = vadd.f32 %v1276, %v1439
        %v1644 = vadd.f32 %v1211, %v1504
        %v1645 = vadd.f32 %v1277, %v1505
        %v1646 = vadd.f32 %v1278, %v1506
        %v1647 = vadd.f32 %v1279, %v1507
        %v1648 = vadd.f32 %v1280, %v1440
        %v1649 = vadd.f32 %v1281, %v1508
        %v1650 = vadd.f32 %v1282, %v1509
        %v1651 = vadd.f32 %v1283, %v1510
        %v1652 = vadd.f32 %v1214, %v1511
        %v1653 = vadd.f32 %v1284, %v1441
        %v1654 = vadd.f32 %v1285, %v1512
        %v1655 = vadd.f32 %v1286, %v1513
        %v1656 = vadd.f32 %v1287, %v1514
        %v1657 = vadd.f32 %v1288, %v1515
        %v1658 = vadd.f32 %v1289, %v1442
        %v1659 = vadd.f32 %v1290, %v1516
        %v1660 = vadd.f32 %v1216, %v1517
        %v1661 = vadd.f32 %v1291, %v1518
        %v1662 = vadd.f32 %v1292, %v1519
        %v1663 = vadd.f32 %v1293, %v1443
        %v1664 = vadd.f32 %v1294, %v1520
        %v1665 = vadd.f32 %v1295, %v1521
        %v1666 = vadd.f32 %v1296, %v1522
        %v1667 = vadd.f32 %v1297, %v1523
        %v1668 = vld [vmem:[%s5] sm:$0x1]
        %v1670 = vperm.slane %v1668, 0
        %v1672 = vrot.slane %v1670, 1
        %v1673 = vrot.slane %v1670, 2
        %v1674 = vrot.slane %v1670, 3
        %v1675 = vrot.slane %v1670, 4
        %v1680 = vadd.f32 %v1588, %v1670
        %v1681 = vadd.f32 %v1589, %v1672
        %v1682 = vadd.f32 %v1590, %v1673
        %v1683 = vadd.f32 %v1591, %v1674
        %v1684 = vadd.f32 %v1592, %v1675
        %v1685 = vadd.f32 %v1593, %v1670
        %v1686 = vadd.f32 %v1594, %v1672
        %v1687 = vadd.f32 %v1595, %v1673
        %v1688 = vadd.f32 %v1596, %v1674
        %v1689 = vadd.f32 %v1597, %v1675
        %v1690 = vadd.f32 %v1598, %v1670
        %v1691 = vadd.f32 %v1599, %v1672
        %v1692 = vadd.f32 %v1600, %v1673
        %v1693 = vadd.f32 %v1601, %v1674
        %v1694 = vadd.f32 %v1602, %v1675
        %v1695 = vadd.f32 %v1603, %v1670
        %v1696 = vadd.f32 %v1604, %v1672
        %v1697 = vadd.f32 %v1605, %v1673
        %v1698 = vadd.f32 %v1606, %v1674
        %v1699 = vadd.f32 %v1607, %v1675
        %v1700 = vadd.f32 %v1608, %v1670
        %v1701 = vadd.f32 %v1609, %v1672
        %v1702 = vadd.f32 %v1610, %v1673
        %v1703 = vadd.f32 %v1611, %v1674
        %v1704 = vadd.f32 %v1612, %v1675
        %v1705 = vadd.f32 %v1613, %v1670
        %v1706 = vadd.f32 %v1614, %v1672
        %v1707 = vadd.f32 %v1615, %v1673
        %v1708 = vadd.f32 %v1616, %v1674
        %v1709 = vadd.f32 %v1617, %v1675
        %v1710 = vadd.f32 %v1618, %v1670
        %v1711 = vadd.f32 %v1619, %v1672
        %v1712 = vadd.f32 %v1620, %v1673
        %v1713 = vadd.f32 %v1621, %v1674
        %v1714 = vadd.f32 %v1622, %v1675
        %v1715 = vadd.f32 %v1623, %v1670
        %v1716 = vadd.f32 %v1624, %v1672
        %v1717 = vadd.f32 %v1625, %v1673
        %v1718 = vadd.f32 %v1626, %v1674
        %v1719 = vadd.f32 %v1627, %v1675
        %v1720 = vadd.f32 %v1628, %v1670
        %v1721 = vadd.f32 %v1629, %v1672
        %v1722 = vadd.f32 %v1630, %v1673
        %v1723 = vadd.f32 %v1631, %v1674
        %v1724 = vadd.f32 %v1632, %v1675
        %v1725 = vadd.f32 %v1633, %v1670
        %v1726 = vadd.f32 %v1634, %v1672
        %v1727 = vadd.f32 %v1635, %v1673
        %v1728 = vadd.f32 %v1636, %v1674
        %v1729 = vadd.f32 %v1637, %v1675
        %v1730 = vadd.f32 %v1638, %v1670
        %v1731 = vadd.f32 %v1639, %v1672
        %v1732 = vadd.f32 %v1640, %v1673
        %v1733 = vadd.f32 %v1641, %v1674
        %v1734 = vadd.f32 %v1642, %v1675
        %v1735 = vadd.f32 %v1643, %v1670
        %v1736 = vadd.f32 %v1644, %v1672
        %v1737 = vadd.f32 %v1645, %v1673
        %v1738 = vadd.f32 %v1646, %v1674
        %v1739 = vadd.f32 %v1647, %v1675
        %v1740 = vadd.f32 %v1648, %v1670
        %v1741 = vadd.f32 %v1649, %v1672
        %v1742 = vadd.f32 %v1650, %v1673
        %v1743 = vadd.f32 %v1651, %v1674
        %v1744 = vadd.f32 %v1652, %v1675
        %v1745 = vadd.f32 %v1653, %v1670
        %v1746 = vadd.f32 %v1654, %v1672
        %v1747 = vadd.f32 %v1655, %v1673
        %v1748 = vadd.f32 %v1656, %v1674
        %v1749 = vadd.f32 %v1657, %v1675
        %v1750 = vadd.f32 %v1658, %v1670
        %v1751 = vadd.f32 %v1659, %v1672
        %v1752 = vadd.f32 %v1660, %v1673
        %v1753 = vadd.f32 %v1661, %v1674
        %v1754 = vadd.f32 %v1662, %v1675
        %v1755 = vadd.f32 %v1663, %v1670
        %v1756 = vadd.f32 %v1664, %v1672
        %v1757 = vadd.f32 %v1665, %v1673
        %v1758 = vadd.f32 %v1666, %v1674
        %v1759 = vadd.f32 %v1667, %v1675
        %vm1760 = vcmp.gt.f32.partialorder %v1680, 0.0
        %vm1761 = vcmp.gt.f32.partialorder %v1681, 0.0
        %vm1762 = vcmp.gt.f32.partialorder %v1682, 0.0
        %vm1763 = vcmp.gt.f32.partialorder %v1683, 0.0
        %vm1764 = vcmp.gt.f32.partialorder %v1684, 0.0
        %vm1765 = vcmp.gt.f32.partialorder %v1685, 0.0
        %vm1766 = vcmp.gt.f32.partialorder %v1686, 0.0
        %vm1767 = vcmp.gt.f32.partialorder %v1687, 0.0
        %vm1768 = vcmp.gt.f32.partialorder %v1688, 0.0
        %vm1769 = vcmp.gt.f32.partialorder %v1689, 0.0
        %vm1770 = vcmp.gt.f32.partialorder %v1690, 0.0
        %vm1771 = vcmp.gt.f32.partialorder %v1691, 0.0
        %vm1772 = vcmp.gt.f32.partialorder %v1692, 0.0
        %vm1773 = vcmp.gt.f32.partialorder %v1693, 0.0
        %vm1774 = vcmp.gt.f32.partialorder %v1694, 0.0
        %vm1775 = vcmp.gt.f32.partialorder %v1695, 0.0
        %vm1776 = vcmp.gt.f32.partialorder %v1696, 0.0
        %vm1777 = vcmp.gt.f32.partialorder %v1697, 0.0
        %vm1778 = vcmp.gt.f32.partialorder %v1698, 0.0
        %vm1779 = vcmp.gt.f32.partialorder %v1699, 0.0
        %vm1780 = vcmp.gt.f32.partialorder %v1700, 0.0
        %vm1781 = vcmp.gt.f32.partialorder %v1701, 0.0
        %vm1782 = vcmp.gt.f32.partialorder %v1702, 0.0
        %vm1783 = vcmp.gt.f32.partialorder %v1703, 0.0
        %vm1784 = vcmp.gt.f32.partialorder %v1704, 0.0
        %vm1785 = vcmp.gt.f32.partialorder %v1705, 0.0
        %vm1786 = vcmp.gt.f32.partialorder %v1706, 0.0
        %vm1787 = vcmp.gt.f32.partialorder %v1707, 0.0
        %vm1788 = vcmp.gt.f32.partialorder %v1708, 0.0
        %vm1789 = vcmp.gt.f32.partialorder %v1709, 0.0
        %vm1790 = vcmp.gt.f32.partialorder %v1710, 0.0
        %vm1791 = vcmp.gt.f32.partialorder %v1711, 0.0
        %vm1792 = vcmp.gt.f32.partialorder %v1712, 0.0
        %vm1793 = vcmp.gt.f32.partialorder %v1713, 0.0
        %vm1794 = vcmp.gt.f32.partialorder %v1714, 0.0
        %vm1795 = vcmp.gt.f32.partialorder %v1715, 0.0
        %vm1796 = vcmp.gt.f32.partialorder %v1716, 0.0
        %vm1797 = vcmp.gt.f32.partialorder %v1717, 0.0
        %vm1798 = vcmp.gt.f32.partialorder %v1718, 0.0
        %vm1799 = vcmp.gt.f32.partialorder %v1719, 0.0
        %vm1800 = vcmp.gt.f32.partialorder %v1720, 0.0
        %vm1801 = vcmp.gt.f32.partialorder %v1721, 0.0
        %vm1802 = vcmp.gt.f32.partialorder %v1722, 0.0
        %vm1803 = vcmp.gt.f32.partialorder %v1723, 0.0
        %vm1804 = vcmp.gt.f32.partialorder %v1724, 0.0
        %vm1805 = vcmp.gt.f32.partialorder %v1725, 0.0
        %vm1806 = vcmp.gt.f32.partialorder %v1726, 0.0
        %vm1807 = vcmp.gt.f32.partialorder %v1727, 0.0
        %vm1808 = vcmp.gt.f32.partialorder %v1728, 0.0
        %vm1809 = vcmp.gt.f32.partialorder %v1729, 0.0
        %vm1810 = vcmp.gt.f32.partialorder %v1730, 0.0
        %vm1811 = vcmp.gt.f32.partialorder %v1731, 0.0
        %vm1812 = vcmp.gt.f32.partialorder %v1732, 0.0
        %vm1813 = vcmp.gt.f32.partialorder %v1733, 0.0
        %vm1814 = vcmp.gt.f32.partialorder %v1734, 0.0
        %vm1815 = vcmp.gt.f32.partialorder %v1735, 0.0
        %vm1816 = vcmp.gt.f32.partialorder %v1736, 0.0
        %vm1817 = vcmp.gt.f32.partialorder %v1737, 0.0
        %vm1818 = vcmp.gt.f32.partialorder %v1738, 0.0
        %vm1819 = vcmp.gt.f32.partialorder %v1739, 0.0
        %vm1820 = vcmp.gt.f32.partialorder %v1740, 0.0
        %vm1821 = vcmp.gt.f32.partialorder %v1741, 0.0
        %vm1822 = vcmp.gt.f32.partialorder %v1742, 0.0
        %vm1823 = vcmp.gt.f32.partialorder %v1743, 0.0
        %vm1824 = vcmp.gt.f32.partialorder %v1744, 0.0
        %vm1825 = vcmp.gt.f32.partialorder %v1745, 0.0
        %vm1826 = vcmp.gt.f32.partialorder %v1746, 0.0
        %vm1827 = vcmp.gt.f32.partialorder %v1747, 0.0
        %vm1828 = vcmp.gt.f32.partialorder %v1748, 0.0
        %vm1829 = vcmp.gt.f32.partialorder %v1749, 0.0
        %vm1830 = vcmp.gt.f32.partialorder %v1750, 0.0
        %vm1831 = vcmp.gt.f32.partialorder %v1751, 0.0
        %vm1832 = vcmp.gt.f32.partialorder %v1752, 0.0
        %vm1833 = vcmp.gt.f32.partialorder %v1753, 0.0
        %vm1834 = vcmp.gt.f32.partialorder %v1754, 0.0
        %vm1835 = vcmp.gt.f32.partialorder %v1755, 0.0
        %vm1836 = vcmp.gt.f32.partialorder %v1756, 0.0
        %vm1837 = vcmp.gt.f32.partialorder %v1757, 0.0
        %vm1838 = vcmp.gt.f32.partialorder %v1758, 0.0
        %vm1839 = vcmp.gt.f32.partialorder %v1759, 0.0
        %v1840 = vstv %s521
        %v1841 = vmul.f32 %v1840, %v1680
        %v1842 = vmul.f32 %v1840, %v1681
        %v1843 = vmul.f32 %v1840, %v1682
        %v1844 = vmul.f32 %v1840, %v1683
        %v1845 = vmul.f32 %v1840, %v1684
        %v1846 = vmul.f32 %v1840, %v1685
        %v1847 = vmul.f32 %v1840, %v1686
        %v1848 = vmul.f32 %v1840, %v1687
        %v1849 = vmul.f32 %v1840, %v1688
        %v1850 = vmul.f32 %v1840, %v1689
        %v1851 = vmul.f32 %v1840, %v1690
        %v1852 = vmul.f32 %v1840, %v1691
        %v1853 = vmul.f32 %v1840, %v1692
        %v1854 = vmul.f32 %v1840, %v1693
        %v1855 = vmul.f32 %v1840, %v1694
        %v1856 = vmul.f32 %v1840, %v1695
        %v1857 = vmul.f32 %v1840, %v1696
        %v1858 = vmul.f32 %v1840, %v1697
        %v1859 = vmul.f32 %v1840, %v1698
        %v1860 = vmul.f32 %v1840, %v1699
        %v1861 = vmul.f32 %v1840, %v1700
        %v1862 = vmul.f32 %v1840, %v1701
        %v1863 = vmul.f32 %v1840, %v1702
        %v1864 = vmul.f32 %v1840, %v1703
        %v1865 = vmul.f32 %v1840, %v1704
        %v1866 = vmul.f32 %v1840, %v1705
        %v1867 = vmul.f32 %v1840, %v1706
        %v1868 = vmul.f32 %v1840, %v1707
        %v1869 = vmul.f32 %v1840, %v1708
        %v1870 = vmul.f32 %v1840, %v1709
        %v1871 = vmul.f32 %v1840, %v1710
        %v1872 = vmul.f32 %v1840, %v1711
        %v1873 = vmul.f32 %v1840, %v1712
        %v1874 = vmul.f32 %v1840, %v1713
        %v1875 = vmul.f32 %v1840, %v1714
        %v1876 = vmul.f32 %v1840, %v1715
        %v1877 = vmul.f32 %v1840, %v1716
        %v1878 = vmul.f32 %v1840, %v1717
        %v1879 = vmul.f32 %v1840, %v1718
        %v1880 = vmul.f32 %v1840, %v1719
        %v1881 = vmul.f32 %v1840, %v1720
        %v1882 = vmul.f32 %v1840, %v1721
        %v1883 = vmul.f32 %v1840, %v1722
        %v1884 = vmul.f32 %v1840, %v1723
        %v1885 = vmul.f32 %v1840, %v1724
        %v1886 = vmul.f32 %v1840, %v1725
        %v1887 = vmul.f32 %v1840, %v1726
        %v1888 = vmul.f32 %v1840, %v1727
        %v1889 = vmul.f32 %v1840, %v1728
        %v1890 = vmul.f32 %v1840, %v1729
        %v1891 = vmul.f32 %v1840, %v1730
        %v1892 = vmul.f32 %v1840, %v1731
        %v1893 = vmul.f32 %v1840, %v1732
        %v1894 = vmul.f32 %v1840, %v1733
        %v1895 = vmul.f32 %v1840, %v1734
        %v1896 = vmul.f32 %v1840, %v1735
        %v1897 = vmul.f32 %v1840, %v1736
        %v1898 = vmul.f32 %v1840, %v1737
        %v1899 = vmul.f32 %v1840, %v1738
        %v1900 = vmul.f32 %v1840, %v1739
        %v1901 = vmul.f32 %v1840, %v1740
        %v1902 = vmul.f32 %v1840, %v1741
        %v1903 = vmul.f32 %v1840, %v1742
        %v1904 = vmul.f32 %v1840, %v1743
        %v1905 = vmul.f32 %v1840, %v1744
        %v1906 = vmul.f32 %v1840, %v1745
        %v1907 = vmul.f32 %v1840, %v1746
        %v1908 = vmul.f32 %v1840, %v1747
        %v1909 = vmul.f32 %v1840, %v1748
        %v1910 = vmul.f32 %v1840, %v1749
        %v1911 = vmul.f32 %v1840, %v1750
        %v1912 = vmul.f32 %v1840, %v1751
        %v1913 = vmul.f32 %v1840, %v1752
        %v1914 = vmul.f32 %v1840, %v1753
        %v1915 = vmul.f32 %v1840, %v1754
        %v1916 = vmul.f32 %v1840, %v1755
        %v1917 = vmul.f32 %v1840, %v1756
        %v1918 = vmul.f32 %v1840, %v1757
        %v1919 = vmul.f32 %v1840, %v1758
        %v1920 = vmul.f32 %v1840, %v1759
        %v1921 = vsel %vm1760, %v1680, %v1841
        %v1922 = vsel %vm1761, %v1681, %v1842
        %v1923 = vsel %vm1762, %v1682, %v1843
        %v1924 = vsel %vm1763, %v1683, %v1844
        %v1925 = vsel %vm1764, %v1684, %v1845
        %v1926 = vsel %vm1765, %v1685, %v1846
        %v1927 = vsel %vm1766, %v1686, %v1847
        %v1928 = vsel %vm1767, %v1687, %v1848
        %v1929 = vsel %vm1768, %v1688, %v1849
        %v1930 = vsel %vm1769, %v1689, %v1850
        %v1931 = vsel %vm1770, %v1690, %v1851
        %v1932 = vsel %vm1771, %v1691, %v1852
        %v1933 = vsel %vm1772, %v1692, %v1853
        %v1934 = vsel %vm1773, %v1693, %v1854
        %v1935 = vsel %vm1774, %v1694, %v1855
        %v1936 = vsel %vm1775, %v1695, %v1856
        %v1937 = vsel %vm1776, %v1696, %v1857
        %v1938 = vsel %vm1777, %v1697, %v1858
        %v1939 = vsel %vm1778, %v1698, %v1859
        %v1940 = vsel %vm1779, %v1699, %v1860
        %v1941 = vsel %vm1780, %v1700, %v1861
        %v1942 = vsel %vm1781, %v1701, %v1862
        %v1943 = vsel %vm1782, %v1702, %v1863
        %v1944 = vsel %vm1783, %v1703, %v1864
        %v1945 = vsel %vm1784, %v1704, %v1865
        %v1946 = vsel %vm1785, %v1705, %v1866
        %v1947 = vsel %vm1786, %v1706, %v1867
        %v1948 = vsel %vm1787, %v1707, %v1868
        %v1949 = vsel %vm1788, %v1708, %v1869
        %v1950 = vsel %vm1789, %v1709, %v1870
        %v1951 = vsel %vm1790, %v1710, %v1871
        %v1952 = vsel %vm1791, %v1711, %v1872
        %v1953 = vsel %vm1792, %v1712, %v1873
        %v1954 = vsel %vm1793, %v1713, %v1874
        %v1955 = vsel %vm1794, %v1714, %v1875
        %v1956 = vsel %vm1795, %v1715, %v1876
        %v1957 = vsel %vm1796, %v1716, %v1877
        %v1958 = vsel %vm1797, %v1717, %v1878
        %v1959 = vsel %vm1798, %v1718, %v1879
        %v1960 = vsel %vm1799, %v1719, %v1880
        %v1961 = vsel %vm1800, %v1720, %v1881
        %v1962 = vsel %vm1801, %v1721, %v1882
        %v1963 = vsel %vm1802, %v1722, %v1883
        %v1964 = vsel %vm1803, %v1723, %v1884
        %v1965 = vsel %vm1804, %v1724, %v1885
        %v1966 = vsel %vm1805, %v1725, %v1886
        %v1967 = vsel %vm1806, %v1726, %v1887
        %v1968 = vsel %vm1807, %v1727, %v1888
        %v1969 = vsel %vm1808, %v1728, %v1889
        %v1970 = vsel %vm1809, %v1729, %v1890
        %v1971 = vsel %vm1810, %v1730, %v1891
        %v1972 = vsel %vm1811, %v1731, %v1892
        %v1973 = vsel %vm1812, %v1732, %v1893
        %v1974 = vsel %vm1813, %v1733, %v1894
        %v1975 = vsel %vm1814, %v1734, %v1895
        %v1976 = vsel %vm1815, %v1735, %v1896
        %v1977 = vsel %vm1816, %v1736, %v1897
        %v1978 = vsel %vm1817, %v1737, %v1898
        %v1979 = vsel %vm1818, %v1738, %v1899
        %v1980 = vsel %vm1819, %v1739, %v1900
        %v1981 = vsel %vm1820, %v1740, %v1901
        %v1982 = vsel %vm1821, %v1741, %v1902
        %v1983 = vsel %vm1822, %v1742, %v1903
        %v1984 = vsel %vm1823, %v1743, %v1904
        %v1985 = vsel %vm1824, %v1744, %v1905
        %v1986 = vsel %vm1825, %v1745, %v1906
        %v1987 = vsel %vm1826, %v1746, %v1907
        %v1988 = vsel %vm1827, %v1747, %v1908
        %v1989 = vsel %vm1828, %v1748, %v1909
        %v1990 = vsel %vm1829, %v1749, %v1910
        %v1991 = vsel %vm1830, %v1750, %v1911
        %v1992 = vsel %vm1831, %v1751, %v1912
        %v1993 = vsel %vm1832, %v1752, %v1913
        %v1994 = vsel %vm1833, %v1753, %v1914
        %v1995 = vsel %vm1834, %v1754, %v1915
        %v1996 = vsel %vm1835, %v1755, %v1916
        %v1997 = vsel %vm1836, %v1756, %v1917
        %v1998 = vsel %vm1837, %v1757, %v1918
        %v1999 = vsel %vm1838, %v1758, %v1919
        %v2000 = vsel %vm1839, %v1759, %v1920
        %v2001 = vld [vmem:[%s6] sm:$0x1]
        %v2003 = vperm.slane %v2001, 0
        %v2005 = vrot.slane %v2003, 1
        %v2006 = vrot.slane %v2003, 2
        %v2007 = vrot.slane %v2003, 3
        %v2008 = vrot.slane %v2003, 4
        %v2013 = vmul.f32 %v1921, %v2003
        %v2014 = vmul.f32 %v1922, %v2005
        %v2015 = vmul.f32 %v1923, %v2006
        %v2016 = vmul.f32 %v1924, %v2007
        %v2017 = vmul.f32 %v1925, %v2008
        %v2018 = vmul.f32 %v1926, %v2003
        %v2019 = vmul.f32 %v1927, %v2005
        %v2020 = vmul.f32 %v1928, %v2006
        %v2021 = vmul.f32 %v1929, %v2007
        %v2022 = vmul.f32 %v1930, %v2008
        %v2023 = vmul.f32 %v1931, %v2003
        %v2024 = vmul.f32 %v1932, %v2005
        %v2025 = vmul.f32 %v1933, %v2006
        %v2026 = vmul.f32 %v1934, %v2007
        %v2027 = vmul.f32 %v1935, %v2008
        %v2028 = vmul.f32 %v1936, %v2003
        %v2029 = vmul.f32 %v1937, %v2005
        %v2030 = vmul.f32 %v1938, %v2006
        %v2031 = vmul.f32 %v1939, %v2007
        %v2032 = vmul.f32 %v1940, %v2008
        %v2033 = vmul.f32 %v1941, %v2003
        %v2034 = vmul.f32 %v1942, %v2005
        %v2035 = vmul.f32 %v1943, %v2006
        %v2036 = vmul.f32 %v1944, %v2007
        %v2037 = vmul.f32 %v1945, %v2008
        %v2038 = vmul.f32 %v1946, %v2003
        %v2039 = vmul.f32 %v1947, %v2005
        %v2040 = vmul.f32 %v1948, %v2006
        %v2041 = vmul.f32 %v1949, %v2007
        %v2042 = vmul.f32 %v1950, %v2008
        %v2043 = vmul.f32 %v1951, %v2003
        %v2044 = vmul.f32 %v1952, %v2005
        %v2045 = vmul.f32 %v1953, %v2006
        %v2046 = vmul.f32 %v1954, %v2007
        %v2047 = vmul.f32 %v1955, %v2008
        %v2048 = vmul.f32 %v1956, %v2003
        %v2049 = vmul.f32 %v1957, %v2005
        %v2050 = vmul.f32 %v1958, %v2006
        %v2051 = vmul.f32 %v1959, %v2007
        %v2052 = vmul.f32 %v1960, %v2008
        %v2053 = vmul.f32 %v1961, %v2003
        %v2054 = vmul.f32 %v1962, %v2005
        %v2055 = vmul.f32 %v1963, %v2006
        %v2056 = vmul.f32 %v1964, %v2007
        %v2057 = vmul.f32 %v1965, %v2008
        %v2058 = vmul.f32 %v1966, %v2003
        %v2059 = vmul.f32 %v1967, %v2005
        %v2060 = vmul.f32 %v1968, %v2006
        %v2061 = vmul.f32 %v1969, %v2007
        %v2062 = vmul.f32 %v1970, %v2008
        %v2063 = vmul.f32 %v1971, %v2003
        %v2064 = vmul.f32 %v1972, %v2005
        %v2065 = vmul.f32 %v1973, %v2006
        %v2066 = vmul.f32 %v1974, %v2007
        %v2067 = vmul.f32 %v1975, %v2008
        %v2068 = vmul.f32 %v1976, %v2003
        %v2069 = vmul.f32 %v1977, %v2005
        %v2070 = vmul.f32 %v1978, %v2006
        %v2071 = vmul.f32 %v1979, %v2007
        %v2072 = vmul.f32 %v1980, %v2008
        %v2073 = vmul.f32 %v1981, %v2003
        %v2074 = vmul.f32 %v1982, %v2005
        %v2075 = vmul.f32 %v1983, %v2006
        %v2076 = vmul.f32 %v1984, %v2007
        %v2077 = vmul.f32 %v1985, %v2008
        %v2078 = vmul.f32 %v1986, %v2003
        %v2079 = vmul.f32 %v1987, %v2005
        %v2080 = vmul.f32 %v1988, %v2006
        %v2081 = vmul.f32 %v1989, %v2007
        %v2082 = vmul.f32 %v1990, %v2008
        %v2083 = vmul.f32 %v1991, %v2003
        %v2084 = vmul.f32 %v1992, %v2005
        %v2085 = vmul.f32 %v1993, %v2006
        %v2086 = vmul.f32 %v1994, %v2007
        %v2087 = vmul.f32 %v1995, %v2008
        %v2088 = vmul.f32 %v1996, %v2003
        %v2089 = vmul.f32 %v1997, %v2005
        %v2090 = vmul.f32 %v1998, %v2006
        %v2091 = vmul.f32 %v1999, %v2007
        %v2092 = vmul.f32 %v2000, %v2008
        %2173 = vst [vmem:[#allocation1] ss:$9 sm:$0xff] %v2013
        %s2174 = scalar_lea.vmem [#allocation1], 1
        %2175 = vst [vmem:[%s2174] ss:$9 sm:$0xff] %v2014
        %s2176 = scalar_lea.vmem [#allocation1], 2
        %2177 = vst [vmem:[%s2176] ss:$9 sm:$0xff] %v2015
        %s2178 = scalar_lea.vmem [#allocation1], 3
        %2179 = vst [vmem:[%s2178] ss:$9 sm:$0xff] %v2016
        %s2180 = scalar_lea.vmem [#allocation1], 4
        %2181 = vst [vmem:[%s2180] ss:$9 sm:$0xff] %v2017
        %v2182 = vld [vmem:[#allocation1] sm:$0xff]
        %2183 = vst [vmem:[#allocation1] ss:$9 sm:$0xff] %v2018
        %2184 = vst [vmem:[%s2174] ss:$9 sm:$0xff] %v2019
        %2185 = vst [vmem:[%s2176] ss:$9 sm:$0xff] %v2020
        %2186 = vst [vmem:[%s2178] ss:$9 sm:$0xff] %v2021
        %2187 = vst [vmem:[%s2180] ss:$9 sm:$0xff] %v2022
        %v2188 = vld [vmem:[#allocation1] sm:$0xff]
        %2189 = vst [vmem:[#allocation1] ss:$9 sm:$0xff] %v2023
        %2190 = vst [vmem:[%s2174] ss:$9 sm:$0xff] %v2024
        %2191 = vst [vmem:[%s2176] ss:$9 sm:$0xff] %v2025
        %2192 = vst [vmem:[%s2178] ss:$9 sm:$0xff] %v2026
        %2193 = vst [vmem:[%s2180] ss:$9 sm:$0xff] %v2027
        %v2194 = vld [vmem:[#allocation1] sm:$0xff]
        %2195 = vst [vmem:[#allocation1] ss:$9 sm:$0xff] %v2028
        %2196 = vst [vmem:[%s2174] ss:$9 sm:$0xff] %v2029
        %2197 = vst [vmem:[%s2176] ss:$9 sm:$0xff] %v2030
        %2198 = vst [vmem:[%s2178] ss:$9 sm:$0xff] %v2031
        %2199 = vst [vmem:[%s2180] ss:$9 sm:$0xff] %v2032
        %v2200 = vld [vmem:[#allocation1] sm:$0xff]
        %2201 = vst [vmem:[#allocation1] ss:$9 sm:$0xff] %v2033
        %2202 = vst [vmem:[%s2174] ss:$9 sm:$0xff] %v2034
        %2203 = vst [vmem:[%s2176] ss:$9 sm:$0xff] %v2035
        %2204 = vst [vmem:[%s2178] ss:$9 sm:$0xff] %v2036
        %2205 = vst [vmem:[%s2180] ss:$9 sm:$0xff] %v2037
        %v2206 = vld [vmem:[#allocation1] sm:$0xff]
        %2207 = vst [vmem:[#allocation1] ss:$9 sm:$0xff] %v2038
        %2208 = vst [vmem:[%s2174] ss:$9 sm:$0xff] %v2039
        %2209 = vst [vmem:[%s2176] ss:$9 sm:$0xff] %v2040
        %2210 = vst [vmem:[%s2178] ss:$9 sm:$0xff] %v2041
        %2211 = vst [vmem:[%s2180] ss:$9 sm:$0xff] %v2042
        %v2212 = vld [vmem:[#allocation1] sm:$0xff]
        %2213 = vst [vmem:[#allocation1] ss:$9 sm:$0xff] %v2043
        %2214 = vst [vmem:[%s2174] ss:$9 sm:$0xff] %v2044
        %2215 = vst [vmem:[%s2176] ss:$9 sm:$0xff] %v2045
        %2216 = vst [vmem:[%s2178] ss:$9 sm:$0xff] %v2046
        %2217 = vst [vmem:[%s2180] ss:$9 sm:$0xff] %v2047
        %v2218 = vld [vmem:[#allocation1] sm:$0xff]
        %2219 = vst [vmem:[#allocation1] ss:$9 sm:$0xff] %v2048
        %2220 = vst [vmem:[%s2174] ss:$9 sm:$0xff] %v2049
        %2221 = vst [vmem:[%s2176] ss:$9 sm:$0xff] %v2050
        %2222 = vst [vmem:[%s2178] ss:$9 sm:$0xff] %v2051
        %2223 = vst [vmem:[%s2180] ss:$9 sm:$0xff] %v2052
        %v2224 = vld [vmem:[#allocation1] sm:$0xff]
        %2225 = vst [vmem:[#allocation1] ss:$9 sm:$0xff] %v2053
        %2226 = vst [vmem:[%s2174] ss:$9 sm:$0xff] %v2054
        %2227 = vst [vmem:[%s2176] ss:$9 sm:$0xff] %v2055
        %2228 = vst [vmem:[%s2178] ss:$9 sm:$0xff] %v2056
        %2229 = vst [vmem:[%s2180] ss:$9 sm:$0xff] %v2057
        %v2230 = vld [vmem:[#allocation1] sm:$0xff]
        %2231 = vst [vmem:[#allocation1] ss:$9 sm:$0xff] %v2058
        %2232 = vst [vmem:[%s2174] ss:$9 sm:$0xff] %v2059
        %2233 = vst [vmem:[%s2176] ss:$9 sm:$0xff] %v2060
        %2234 = vst [vmem:[%s2178] ss:$9 sm:$0xff] %v2061
        %2235 = vst [vmem:[%s2180] ss:$9 sm:$0xff] %v2062
        %v2236 = vld [vmem:[#allocation1] sm:$0xff]
        %2237 = vst [vmem:[#allocation1] ss:$9 sm:$0xff] %v2063
        %2238 = vst [vmem:[%s2174] ss:$9 sm:$0xff] %v2064
        %2239 = vst [vmem:[%s2176] ss:$9 sm:$0xff] %v2065
        %2240 = vst [vmem:[%s2178] ss:$9 sm:$0xff] %v2066
        %2241 = vst [vmem:[%s2180] ss:$9 sm:$0xff] %v2067
        %v2242 = vld [vmem:[#allocation1] sm:$0xff]
        %2243 = vst [vmem:[#allocation1] ss:$9 sm:$0xff] %v2068
        %2244 = vst [vmem:[%s2174] ss:$9 sm:$0xff] %v2069
        %2245 = vst [vmem:[%s2176] ss:$9 sm:$0xff] %v2070
        %2246 = vst [vmem:[%s2178] ss:$9 sm:$0xff] %v2071
        %2247 = vst [vmem:[%s2180] ss:$9 sm:$0xff] %v2072
        %v2248 = vld [vmem:[#allocation1] sm:$0xff]
        %2249 = vst [vmem:[#allocation1] ss:$9 sm:$0xff] %v2073
        %2250 = vst [vmem:[%s2174] ss:$9 sm:$0xff] %v2074
        %2251 = vst [vmem:[%s2176] ss:$9 sm:$0xff] %v2075
        %2252 = vst [vmem:[%s2178] ss:$9 sm:$0xff] %v2076
        %2253 = vst [vmem:[%s2180] ss:$9 sm:$0xff] %v2077
        %v2254 = vld [vmem:[#allocation1] sm:$0xff]
        %2255 = vst [vmem:[#allocation1] ss:$9 sm:$0xff] %v2078
        %2256 = vst [vmem:[%s2174] ss:$9 sm:$0xff] %v2079
        %2257 = vst [vmem:[%s2176] ss:$9 sm:$0xff] %v2080
        %2258 = vst [vmem:[%s2178] ss:$9 sm:$0xff] %v2081
        %2259 = vst [vmem:[%s2180] ss:$9 sm:$0xff] %v2082
        %v2260 = vld [vmem:[#allocation1] sm:$0xff]
        %2261 = vst [vmem:[#allocation1] ss:$9 sm:$0xff] %v2083
        %2262 = vst [vmem:[%s2174] ss:$9 sm:$0xff] %v2084
        %2263 = vst [vmem:[%s2176] ss:$9 sm:$0xff] %v2085
        %2264 = vst [vmem:[%s2178] ss:$9 sm:$0xff] %v2086
        %2265 = vst [vmem:[%s2180] ss:$9 sm:$0xff] %v2087
        %v2266 = vld [vmem:[#allocation1] sm:$0xff]
        %2267 = vst [vmem:[#allocation1] ss:$9 sm:$0xff] %v2088
        %2268 = vst [vmem:[%s2174] ss:$9 sm:$0xff] %v2089
        %2269 = vst [vmem:[%s2176] ss:$9 sm:$0xff] %v2090
        %2270 = vst [vmem:[%s2178] ss:$9 sm:$0xff] %v2091
        %2271 = vst [vmem:[%s2180] ss:$9 sm:$0xff] %v2092
        %v2272 = vld [vmem:[#allocation1] sm:$0xff]
        %vm2289 = vcmask 258048
        %v2290 = vsel %vm2289, %v2182, 0.0
        %2291 = vadd.xlane.f32.xlu0 %v2290
        %v2292 = vpop.xlane.xlu0 %2291
        %v2293 = vsel %vm2289, %v2188, 0.0
        %2294 = vadd.xlane.f32.xlu0 %v2293
        %v2295 = vpop.xlane.xlu0 %2294
        %v2296 = vsel %vm2289, %v2194, 0.0
        %2297 = vadd.xlane.f32.xlu0 %v2296
        %v2298 = vpop.xlane.xlu0 %2297
        %v2299 = vsel %vm2289, %v2200, 0.0
        %2300 = vadd.xlane.f32.xlu0 %v2299
        %v2301 = vpop.xlane.xlu0 %2300
        %v2302 = vsel %vm2289, %v2206, 0.0
        %2303 = vadd.xlane.f32.xlu0 %v2302
        %v2304 = vpop.xlane.xlu0 %2303
        %v2305 = vsel %vm2289, %v2212, 0.0
        %2306 = vadd.xlane.f32.xlu0 %v2305
        %v2307 = vpop.xlane.xlu0 %2306
        %v2308 = vsel %vm2289, %v2218, 0.0
        %2309 = vadd.xlane.f32.xlu0 %v2308
        %v2310 = vpop.xlane.xlu0 %2309
        %v2311 = vsel %vm2289, %v2224, 0.0
        %2312 = vadd.xlane.f32.xlu0 %v2311
        %v2313 = vpop.xlane.xlu0 %2312
        %v2314 = vsel %vm2289, %v2230, 0.0
        %2315 = vadd.xlane.f32.xlu0 %v2314
        %v2316 = vpop.xlane.xlu0 %2315
        %v2317 = vsel %vm2289, %v2236, 0.0
        %2318 = vadd.xlane.f32.xlu0 %v2317
        %v2319 = vpop.xlane.xlu0 %2318
        %v2320 = vsel %vm2289, %v2242, 0.0
        %2321 = vadd.xlane.f32.xlu0 %v2320
        %v2322 = vpop.xlane.xlu0 %2321
        %v2323 = vsel %vm2289, %v2248, 0.0
        %2324 = vadd.xlane.f32.xlu0 %v2323
        %v2325 = vpop.xlane.xlu0 %2324
        %v2326 = vsel %vm2289, %v2254, 0.0
        %2327 = vadd.xlane.f32.xlu0 %v2326
        %v2328 = vpop.xlane.xlu0 %2327
        %v2329 = vsel %vm2289, %v2260, 0.0
        %2330 = vadd.xlane.f32.xlu0 %v2329
        %v2331 = vpop.xlane.xlu0 %2330
        %v2332 = vsel %vm2289, %v2266, 0.0
        %2333 = vadd.xlane.f32.xlu0 %v2332
        %v2334 = vpop.xlane.xlu0 %2333
        %v2335 = vsel %vm2289, %v2272, 0.0
        %2336 = vadd.xlane.f32.xlu0 %v2335
        %v2337 = vpop.xlane.xlu0 %2336
        %v2338 = vstv %s524
        %v2339 = vadd.f32 %v2292, %v2338
        %v2340 = vadd.f32 %v2295, %v2338
        %v2341 = vadd.f32 %v2298, %v2338
        %v2342 = vadd.f32 %v2301, %v2338
        %v2343 = vadd.f32 %v2304, %v2338
        %v2344 = vadd.f32 %v2307, %v2338
        %v2345 = vadd.f32 %v2310, %v2338
        %v2346 = vadd.f32 %v2313, %v2338
        %v2347 = vadd.f32 %v2316, %v2338
        %v2348 = vadd.f32 %v2319, %v2338
        %v2349 = vadd.f32 %v2322, %v2338
        %v2350 = vadd.f32 %v2325, %v2338
        %v2351 = vadd.f32 %v2328, %v2338
        %v2352 = vadd.f32 %v2331, %v2338
        %v2353 = vadd.f32 %v2334, %v2338
        %v2354 = vadd.f32 %v2337, %v2338
        %v2355 = vxor.u32 %v2339, 2147483648
        %v2356 = vxor.u32 %v2340, 2147483648
        %v2357 = vxor.u32 %v2341, 2147483648
        %v2358 = vxor.u32 %v2342, 2147483648
        %v2359 = vxor.u32 %v2343, 2147483648
        %v2360 = vxor.u32 %v2344, 2147483648
        %v2361 = vxor.u32 %v2345, 2147483648
        %v2362 = vxor.u32 %v2346, 2147483648
        %v2363 = vxor.u32 %v2347, 2147483648
        %v2364 = vxor.u32 %v2348, 2147483648
        %v2365 = vxor.u32 %v2349, 2147483648
        %v2366 = vxor.u32 %v2350, 2147483648
        %v2367 = vxor.u32 %v2351, 2147483648
        %v2368 = vxor.u32 %v2352, 2147483648
        %v2369 = vxor.u32 %v2353, 2147483648
        %v2370 = vxor.u32 %v2354, 2147483648
        %v2371 = vmul.f32 %v2355, 1.442695
        %v2372 = vpow.pop %v2371
        %v2373 = vmul.f32 %v2356, 1.442695
        %v2374 = vpow.pop %v2373
        %v2375 = vmul.f32 %v2357, 1.442695
        %v2376 = vpow.pop %v2375
        %v2377 = vmul.f32 %v2358, 1.442695
        %v2378 = vpow.pop %v2377
        %v2379 = vmul.f32 %v2359, 1.442695
        %v2380 = vpow.pop %v2379
        %v2381 = vmul.f32 %v2360, 1.442695
        %v2382 = vpow.pop %v2381
        %v2383 = vmul.f32 %v2361, 1.442695
        %v2384 = vpow.pop %v2383
        %v2385 = vmul.f32 %v2362, 1.442695
        %v2386 = vpow.pop %v2385
        %v2387 = vmul.f32 %v2363, 1.442695
        %v2388 = vpow.pop %v2387
        %v2389 = vmul.f32 %v2364, 1.442695
        %v2390 = vpow.pop %v2389
        %v2391 = vmul.f32 %v2365, 1.442695
        %v2392 = vpow.pop %v2391
        %v2393 = vmul.f32 %v2366, 1.442695
        %v2394 = vpow.pop %v2393
        %v2395 = vmul.f32 %v2367, 1.442695
        %v2396 = vpow.pop %v2395
        %v2397 = vmul.f32 %v2368, 1.442695
        %v2398 = vpow.pop %v2397
        %v2399 = vmul.f32 %v2369, 1.442695
        %v2400 = vpow.pop %v2399
        %v2401 = vmul.f32 %v2370, 1.442695
        %v2402 = vpow.pop %v2401
        %v2403 = vadd.f32 %v2372, 1.0
        %v2404 = vadd.f32 %v2374, 1.0
        %v2405 = vadd.f32 %v2376, 1.0
        %v2406 = vadd.f32 %v2378, 1.0
        %v2407 = vadd.f32 %v2380, 1.0
        %v2408 = vadd.f32 %v2382, 1.0
        %v2409 = vadd.f32 %v2384, 1.0
        %v2410 = vadd.f32 %v2386, 1.0
        %v2411 = vadd.f32 %v2388, 1.0
        %v2412 = vadd.f32 %v2390, 1.0
        %v2413 = vadd.f32 %v2392, 1.0
        %v2414 = vadd.f32 %v2394, 1.0
        %v2415 = vadd.f32 %v2396, 1.0
        %v2416 = vadd.f32 %v2398, 1.0
        %v2417 = vadd.f32 %v2400, 1.0
        %v2418 = vadd.f32 %v2402, 1.0
        %v2419 = vrcp.pop %v2403
        %v2420 = vmul.f32 %v2403, %v2419
        %v2421 = vsub.f32 1.0, %v2420
        %v2422 = vmul.f32 %v2419, %v2421
        %v2423 = vadd.f32 %v2419, %v2422
        %vm2424 = vweird.f32 %v2403
        %vm2425 = vweird.f32 %v2419
        %vm2426 = vmor %vm2424, %vm2425
        %v2427 = vsel %vm2426, %v2419, %v2423
        %v2428 = vand.u32 2147483647, %v2403
        %vm2429 = vcmp.eq.f32.partialorder %v2428, 8.507059e+37
        %v2430 = vand.u32 %v2403, 2147483648
        %v2431 = vor.u32 1.1754944e-38, %v2430
        %v2432 = vsel %vm2429, %v2431, %v2427
        %v2433 = vmul.f32 1.0, %v2432
        %v2434 = vrcp.pop %v2404
        %v2435 = vmul.f32 %v2404, %v2434
        %v2436 = vsub.f32 1.0, %v2435
        %v2437 = vmul.f32 %v2434, %v2436
        %v2438 = vadd.f32 %v2434, %v2437
        %vm2439 = vweird.f32 %v2404
        %vm2440 = vweird.f32 %v2434
        %vm2441 = vmor %vm2439, %vm2440
        %v2442 = vsel %vm2441, %v2434, %v2438
        %v2443 = vand.u32 2147483647, %v2404
        %vm2444 = vcmp.eq.f32.partialorder %v2443, 8.507059e+37
        %v2445 = vand.u32 %v2404, 2147483648
        %v2446 = vor.u32 1.1754944e-38, %v2445
        %v2447 = vsel %vm2444, %v2446, %v2442
        %v2448 = vmul.f32 1.0, %v2447
        %v2449 = vrcp.pop %v2405
        %v2450 = vmul.f32 %v2405, %v2449
        %v2451 = vsub.f32 1.0, %v2450
        %v2452 = vmul.f32 %v2449, %v2451
        %v2453 = vadd.f32 %v2449, %v2452
        %vm2454 = vweird.f32 %v2405
        %vm2455 = vweird.f32 %v2449
        %vm2456 = vmor %vm2454, %vm2455
        %v2457 = vsel %vm2456, %v2449, %v2453
        %v2458 = vand.u32 2147483647, %v2405
        %vm2459 = vcmp.eq.f32.partialorder %v2458, 8.507059e+37
        %v2460 = vand.u32 %v2405, 2147483648
        %v2461 = vor.u32 1.1754944e-38, %v2460
        %v2462 = vsel %vm2459, %v2461, %v2457
        %v2463 = vmul.f32 1.0, %v2462
        %v2464 = vrcp.pop %v2406
        %v2465 = vmul.f32 %v2406, %v2464
        %v2466 = vsub.f32 1.0, %v2465
        %v2467 = vmul.f32 %v2464, %v2466
        %v2468 = vadd.f32 %v2464, %v2467
        %vm2469 = vweird.f32 %v2406
        %vm2470 = vweird.f32 %v2464
        %vm2471 = vmor %vm2469, %vm2470
        %v2472 = vsel %vm2471, %v2464, %v2468
        %v2473 = vand.u32 2147483647, %v2406
        %vm2474 = vcmp.eq.f32.partialorder %v2473, 8.507059e+37
        %v2475 = vand.u32 %v2406, 2147483648
        %v2476 = vor.u32 1.1754944e-38, %v2475
        %v2477 = vsel %vm2474, %v2476, %v2472
        %v2478 = vmul.f32 1.0, %v2477
        %v2479 = vrcp.pop %v2407
        %v2480 = vmul.f32 %v2407, %v2479
        %v2481 = vsub.f32 1.0, %v2480
        %v2482 = vmul.f32 %v2479, %v2481
        %v2483 = vadd.f32 %v2479, %v2482
        %vm2484 = vweird.f32 %v2407
        %vm2485 = vweird.f32 %v2479
        %vm2486 = vmor %vm2484, %vm2485
        %v2487 = vsel %vm2486, %v2479, %v2483
        %v2488 = vand.u32 2147483647, %v2407
        %vm2489 = vcmp.eq.f32.partialorder %v2488, 8.507059e+37
        %v2490 = vand.u32 %v2407, 2147483648
        %v2491 = vor.u32 1.1754944e-38, %v2490
        %v2492 = vsel %vm2489, %v2491, %v2487
        %v2493 = vmul.f32 1.0, %v2492
        %v2494 = vrcp.pop %v2408
        %v2495 = vmul.f32 %v2408, %v2494
        %v2496 = vsub.f32 1.0, %v2495
        %v2497 = vmul.f32 %v2494, %v2496
        %v2498 = vadd.f32 %v2494, %v2497
        %vm2499 = vweird.f32 %v2408
        %vm2500 = vweird.f32 %v2494
        %vm2501 = vmor %vm2499, %vm2500
        %v2502 = vsel %vm2501, %v2494, %v2498
        %v2503 = vand.u32 2147483647, %v2408
        %vm2504 = vcmp.eq.f32.partialorder %v2503, 8.507059e+37
        %v2505 = vand.u32 %v2408, 2147483648
        %v2506 = vor.u32 1.1754944e-38, %v2505
        %v2507 = vsel %vm2504, %v2506, %v2502
        %v2508 = vmul.f32 1.0, %v2507
        %v2509 = vrcp.pop %v2409
        %v2510 = vmul.f32 %v2409, %v2509
        %v2511 = vsub.f32 1.0, %v2510
        %v2512 = vmul.f32 %v2509, %v2511
        %v2513 = vadd.f32 %v2509, %v2512
        %vm2514 = vweird.f32 %v2409
        %vm2515 = vweird.f32 %v2509
        %vm2516 = vmor %vm2514, %vm2515
        %v2517 = vsel %vm2516, %v2509, %v2513
        %v2518 = vand.u32 2147483647, %v2409
        %vm2519 = vcmp.eq.f32.partialorder %v2518, 8.507059e+37
        %v2520 = vand.u32 %v2409, 2147483648
        %v2521 = vor.u32 1.1754944e-38, %v2520
        %v2522 = vsel %vm2519, %v2521, %v2517
        %v2523 = vmul.f32 1.0, %v2522
        %v2524 = vrcp.pop %v2410
        %v2525 = vmul.f32 %v2410, %v2524
        %v2526 = vsub.f32 1.0, %v2525
        %v2527 = vmul.f32 %v2524, %v2526
        %v2528 = vadd.f32 %v2524, %v2527
        %vm2529 = vweird.f32 %v2410
        %vm2530 = vweird.f32 %v2524
        %vm2531 = vmor %vm2529, %vm2530
        %v2532 = vsel %vm2531, %v2524, %v2528
        %v2533 = vand.u32 2147483647, %v2410
        %vm2534 = vcmp.eq.f32.partialorder %v2533, 8.507059e+37
        %v2535 = vand.u32 %v2410, 2147483648
        %v2536 = vor.u32 1.1754944e-38, %v2535
        %v2537 = vsel %vm2534, %v2536, %v2532
        %v2538 = vmul.f32 1.0, %v2537
        %v2539 = vrcp.pop %v2411
        %v2540 = vmul.f32 %v2411, %v2539
        %v2541 = vsub.f32 1.0, %v2540
        %v2542 = vmul.f32 %v2539, %v2541
        %v2543 = vadd.f32 %v2539, %v2542
        %vm2544 = vweird.f32 %v2411
        %vm2545 = vweird.f32 %v2539
        %vm2546 = vmor %vm2544, %vm2545
        %v2547 = vsel %vm2546, %v2539, %v2543
        %v2548 = vand.u32 2147483647, %v2411
        %vm2549 = vcmp.eq.f32.partialorder %v2548, 8.507059e+37
        %v2550 = vand.u32 %v2411, 2147483648
        %v2551 = vor.u32 1.1754944e-38, %v2550
        %v2552 = vsel %vm2549, %v2551, %v2547
        %v2553 = vmul.f32 1.0, %v2552
        %v2554 = vrcp.pop %v2412
        %v2555 = vmul.f32 %v2412, %v2554
        %v2556 = vsub.f32 1.0, %v2555
        %v2557 = vmul.f32 %v2554, %v2556
        %v2558 = vadd.f32 %v2554, %v2557
        %vm2559 = vweird.f32 %v2412
        %vm2560 = vweird.f32 %v2554
        %vm2561 = vmor %vm2559, %vm2560
        %v2562 = vsel %vm2561, %v2554, %v2558
        %v2563 = vand.u32 2147483647, %v2412
        %vm2564 = vcmp.eq.f32.partialorder %v2563, 8.507059e+37
        %v2565 = vand.u32 %v2412, 2147483648
        %v2566 = vor.u32 1.1754944e-38, %v2565
        %v2567 = vsel %vm2564, %v2566, %v2562
        %v2568 = vmul.f32 1.0, %v2567
        %v2569 = vrcp.pop %v2413
        %v2570 = vmul.f32 %v2413, %v2569
        %v2571 = vsub.f32 1.0, %v2570
        %v2572 = vmul.f32 %v2569, %v2571
        %v2573 = vadd.f32 %v2569, %v2572
        %vm2574 = vweird.f32 %v2413
        %vm2575 = vweird.f32 %v2569
        %vm2576 = vmor %vm2574, %vm2575
        %v2577 = vsel %vm2576, %v2569, %v2573
        %v2578 = vand.u32 2147483647, %v2413
        %vm2579 = vcmp.eq.f32.partialorder %v2578, 8.507059e+37
        %v2580 = vand.u32 %v2413, 2147483648
        %v2581 = vor.u32 1.1754944e-38, %v2580
        %v2582 = vsel %vm2579, %v2581, %v2577
        %v2583 = vmul.f32 1.0, %v2582
        %v2584 = vrcp.pop %v2414
        %v2585 = vmul.f32 %v2414, %v2584
        %v2586 = vsub.f32 1.0, %v2585
        %v2587 = vmul.f32 %v2584, %v2586
        %v2588 = vadd.f32 %v2584, %v2587
        %vm2589 = vweird.f32 %v2414
        %vm2590 = vweird.f32 %v2584
        %vm2591 = vmor %vm2589, %vm2590
        %v2592 = vsel %vm2591, %v2584, %v2588
        %v2593 = vand.u32 2147483647, %v2414
        %vm2594 = vcmp.eq.f32.partialorder %v2593, 8.507059e+37
        %v2595 = vand.u32 %v2414, 2147483648
        %v2596 = vor.u32 1.1754944e-38, %v2595
        %v2597 = vsel %vm2594, %v2596, %v2592
        %v2598 = vmul.f32 1.0, %v2597
        %v2599 = vrcp.pop %v2415
        %v2600 = vmul.f32 %v2415, %v2599
        %v2601 = vsub.f32 1.0, %v2600
        %v2602 = vmul.f32 %v2599, %v2601
        %v2603 = vadd.f32 %v2599, %v2602
        %vm2604 = vweird.f32 %v2415
        %vm2605 = vweird.f32 %v2599
        %vm2606 = vmor %vm2604, %vm2605
        %v2607 = vsel %vm2606, %v2599, %v2603
        %v2608 = vand.u32 2147483647, %v2415
        %vm2609 = vcmp.eq.f32.partialorder %v2608, 8.507059e+37
        %v2610 = vand.u32 %v2415, 2147483648
        %v2611 = vor.u32 1.1754944e-38, %v2610
        %v2612 = vsel %vm2609, %v2611, %v2607
        %v2613 = vmul.f32 1.0, %v2612
        %v2614 = vrcp.pop %v2416
        %v2615 = vmul.f32 %v2416, %v2614
        %v2616 = vsub.f32 1.0, %v2615
        %v2617 = vmul.f32 %v2614, %v2616
        %v2618 = vadd.f32 %v2614, %v2617
        %vm2619 = vweird.f32 %v2416
        %vm2620 = vweird.f32 %v2614
        %vm2621 = vmor %vm2619, %vm2620
        %v2622 = vsel %vm2621, %v2614, %v2618
        %v2623 = vand.u32 2147483647, %v2416
        %vm2624 = vcmp.eq.f32.partialorder %v2623, 8.507059e+37
        %v2625 = vand.u32 %v2416, 2147483648
        %v2626 = vor.u32 1.1754944e-38, %v2625
        %v2627 = vsel %vm2624, %v2626, %v2622
        %v2628 = vmul.f32 1.0, %v2627
        %v2629 = vrcp.pop %v2417
        %v2630 = vmul.f32 %v2417, %v2629
        %v2631 = vsub.f32 1.0, %v2630
        %v2632 = vmul.f32 %v2629, %v2631
        %v2633 = vadd.f32 %v2629, %v2632
        %vm2634 = vweird.f32 %v2417
        %vm2635 = vweird.f32 %v2629
        %vm2636 = vmor %vm2634, %vm2635
        %v2637 = vsel %vm2636, %v2629, %v2633
        %v2638 = vand.u32 2147483647, %v2417
        %vm2639 = vcmp.eq.f32.partialorder %v2638, 8.507059e+37
        %v2640 = vand.u32 %v2417, 2147483648
        %v2641 = vor.u32 1.1754944e-38, %v2640
        %v2642 = vsel %vm2639, %v2641, %v2637
        %v2643 = vmul.f32 1.0, %v2642
        %v2644 = vrcp.pop %v2418
        %v2645 = vmul.f32 %v2418, %v2644
        %v2646 = vsub.f32 1.0, %v2645
        %v2647 = vmul.f32 %v2644, %v2646
        %v2648 = vadd.f32 %v2644, %v2647
        %vm2649 = vweird.f32 %v2418
        %vm2650 = vweird.f32 %v2644
        %vm2651 = vmor %vm2649, %vm2650
        %v2652 = vsel %vm2651, %v2644, %v2648
        %v2653 = vand.u32 2147483647, %v2418
        %vm2654 = vcmp.eq.f32.partialorder %v2653, 8.507059e+37
        %v2655 = vand.u32 %v2418, 2147483648
        %v2656 = vor.u32 1.1754944e-38, %v2655
        %v2657 = vsel %vm2654, %v2656, %v2652
        %v2658 = vmul.f32 1.0, %v2657
        %v2659 = vmul.f32 %v2433, %v672
        %v2660 = vmul.f32 %v2448, %v673
        %v2661 = vmul.f32 %v2463, %v674
        %v2662 = vmul.f32 %v2478, %v675
        %v2663 = vmul.f32 %v2493, %v676
        %v2664 = vmul.f32 %v2508, %v677
        %v2665 = vmul.f32 %v2523, %v678
        %v2666 = vmul.f32 %v2538, %v679
        %v2667 = vmul.f32 %v2553, %v680
        %v2668 = vmul.f32 %v2568, %v681
        %v2669 = vmul.f32 %v2583, %v682
        %v2670 = vmul.f32 %v2598, %v683
        %v2671 = vmul.f32 %v2613, %v684
        %v2672 = vmul.f32 %v2628, %v685
        %v2673 = vmul.f32 %v2643, %v686
        %v2674 = vmul.f32 %v2658, %v687
        %vm2675 = vcmask 389120
        %v2676 = vsel %vm2675, %v2659, 0.0
        %v2677 = vrot.slane %v2676, 4
        %v2678 = vadd.f32 %v2676, %v2677
        %v2679 = vrot.slane %v2678, 2
        %v2680 = vadd.f32 %v2678, %v2679
        %v2681 = vrot.slane %v2680, 1
        %v2682 = vadd.f32 %v2680, %v2681
        %v2683 = vsel %vm2675, %v2660, 0.0
        %v2684 = vrot.slane %v2683, 4
        %v2685 = vadd.f32 %v2683, %v2684
        %v2686 = vrot.slane %v2685, 2
        %v2687 = vadd.f32 %v2685, %v2686
        %v2688 = vrot.slane %v2687, 1
        %v2689 = vadd.f32 %v2687, %v2688
        %v2690 = vsel %vm2675, %v2661, 0.0
        %v2691 = vrot.slane %v2690, 4
        %v2692 = vadd.f32 %v2690, %v2691
        %v2693 = vrot.slane %v2692, 2
        %v2694 = vadd.f32 %v2692, %v2693
        %v2695 = vrot.slane %v2694, 1
        %v2696 = vadd.f32 %v2694, %v2695
        %v2697 = vsel %vm2675, %v2662, 0.0
        %v2698 = vrot.slane %v2697, 4
        %v2699 = vadd.f32 %v2697, %v2698
        %v2700 = vrot.slane %v2699, 2
        %v2701 = vadd.f32 %v2699, %v2700
        %v2702 = vrot.slane %v2701, 1
        %v2703 = vadd.f32 %v2701, %v2702
        %v2704 = vsel %vm2675, %v2663, 0.0
        %v2705 = vrot.slane %v2704, 4
        %v2706 = vadd.f32 %v2704, %v2705
        %v2707 = vrot.slane %v2706, 2
        %v2708 = vadd.f32 %v2706, %v2707
        %v2709 = vrot.slane %v2708, 1
        %v2710 = vadd.f32 %v2708, %v2709
        %v2711 = vsel %vm2675, %v2664, 0.0
        %v2712 = vrot.slane %v2711, 4
        %v2713 = vadd.f32 %v2711, %v2712
        %v2714 = vrot.slane %v2713, 2
        %v2715 = vadd.f32 %v2713, %v2714
        %v2716 = vrot.slane %v2715, 1
        %v2717 = vadd.f32 %v2715, %v2716
        %v2718 = vsel %vm2675, %v2665, 0.0
        %v2719 = vrot.slane %v2718, 4
        %v2720 = vadd.f32 %v2718, %v2719
        %v2721 = vrot.slane %v2720, 2
        %v2722 = vadd.f32 %v2720, %v2721
        %v2723 = vrot.slane %v2722, 1
        %v2724 = vadd.f32 %v2722, %v2723
        %v2725 = vsel %vm2675, %v2666, 0.0
        %v2726 = vrot.slane %v2725, 4
        %v2727 = vadd.f32 %v2725, %v2726
        %v2728 = vrot.slane %v2727, 2
        %v2729 = vadd.f32 %v2727, %v2728
        %v2730 = vrot.slane %v2729, 1
        %v2731 = vadd.f32 %v2729, %v2730
        %v2732 = vsel %vm2675, %v2667, 0.0
        %v2733 = vrot.slane %v2732, 4
        %v2734 = vadd.f32 %v2732, %v2733
        %v2735 = vrot.slane %v2734, 2
        %v2736 = vadd.f32 %v2734, %v2735
        %v2737 = vrot.slane %v2736, 1
        %v2738 = vadd.f32 %v2736, %v2737
        %v2739 = vsel %vm2675, %v2668, 0.0
        %v2740 = vrot.slane %v2739, 4
        %v2741 = vadd.f32 %v2739, %v2740
        %v2742 = vrot.slane %v2741, 2
        %v2743 = vadd.f32 %v2741, %v2742
        %v2744 = vrot.slane %v2743, 1
        %v2745 = vadd.f32 %v2743, %v2744
        %v2746 = vsel %vm2675, %v2669, 0.0
        %v2747 = vrot.slane %v2746, 4
        %v2748 = vadd.f32 %v2746, %v2747
        %v2749 = vrot.slane %v2748, 2
        %v2750 = vadd.f32 %v2748, %v2749
        %v2751 = vrot.slane %v2750, 1
        %v2752 = vadd.f32 %v2750, %v2751
        %v2753 = vsel %vm2675, %v2670, 0.0
        %v2754 = vrot.slane %v2753, 4
        %v2755 = vadd.f32 %v2753, %v2754
        %v2756 = vrot.slane %v2755, 2
        %v2757 = vadd.f32 %v2755, %v2756
        %v2758 = vrot.slane %v2757, 1
        %v2759 = vadd.f32 %v2757, %v2758
        %v2760 = vsel %vm2675, %v2671, 0.0
        %v2761 = vrot.slane %v2760, 4
        %v2762 = vadd.f32 %v2760, %v2761
        %v2763 = vrot.slane %v2762, 2
        %v2764 = vadd.f32 %v2762, %v2763
        %v2765 = vrot.slane %v2764, 1
        %v2766 = vadd.f32 %v2764, %v2765
        %v2767 = vsel %vm2675, %v2672, 0.0
        %v2768 = vrot.slane %v2767, 4
        %v2769 = vadd.f32 %v2767, %v2768
        %v2770 = vrot.slane %v2769, 2
        %v2771 = vadd.f32 %v2769, %v2770
        %v2772 = vrot.slane %v2771, 1
        %v2773 = vadd.f32 %v2771, %v2772
        %v2774 = vsel %vm2675, %v2673, 0.0
        %v2775 = vrot.slane %v2774, 4
        %v2776 = vadd.f32 %v2774, %v2775
        %v2777 = vrot.slane %v2776, 2
        %v2778 = vadd.f32 %v2776, %v2777
        %v2779 = vrot.slane %v2778, 1
        %v2780 = vadd.f32 %v2778, %v2779
        %v2781 = vsel %vm2675, %v2674, 0.0
        %v2782 = vrot.slane %v2781, 4
        %v2783 = vadd.f32 %v2781, %v2782
        %v2784 = vrot.slane %v2783, 2
        %v2785 = vadd.f32 %v2783, %v2784
        %v2786 = vrot.slane %v2785, 1
        %v2787 = vadd.f32 %v2785, %v2786
        %v2788 = vld [vmem:[%s494] sm:$0xf]
        %v2789 = vld [vmem:[%s494 + $0x4] sm:$0xf]
        %v2790 = vpack.c.bf16 %v2682, %v2682
        %v2791 = vpack.c.bf16 %v2689, %v2689
        %v2792 = vpack.c.bf16 %v2696, %v2696
        %v2793 = vpack.c.bf16 %v2703, %v2703
        %v2794 = vpack.c.bf16 %v2710, %v2710
        %v2795 = vpack.c.bf16 %v2717, %v2717
        %v2796 = vpack.c.bf16 %v2724, %v2724
        %v2797 = vpack.c.bf16 %v2731, %v2731
        %v2798 = vpack.c.bf16 %v2738, %v2738
        %v2799 = vpack.c.bf16 %v2745, %v2745
        %v2800 = vpack.c.bf16 %v2752, %v2752
        %v2801 = vpack.c.bf16 %v2759, %v2759
        %v2802 = vpack.c.bf16 %v2766, %v2766
        %v2803 = vpack.c.bf16 %v2773, %v2773
        %v2804 = vpack.c.bf16 %v2780, %v2780
        %v2805 = vpack.c.bf16 %v2787, %v2787
        %v2808 = vunpack.c.l.b16 %v2788
        %v2809 = vunpack.c.l.b16 %v2789
        %v2810 = vpack.c.b16 %v2809, %v2808
        %v2827 = vperm.slane %v2790, 0
        %v2828 = vperm.slane %v2791, 0
        %v2829 = vperm.slane %v2792, 0
        %v2830 = vperm.slane %v2793, 0
        %v2831 = vperm.slane %v2794, 0
        %v2832 = vperm.slane %v2795, 0
        %v2833 = vperm.slane %v2796, 0
        %v2834 = vperm.slane %v2797, 0
        %v2835 = vperm.slane %v2798, 0
        %v2836 = vperm.slane %v2799, 0
        %v2837 = vperm.slane %v2800, 0
        %v2838 = vperm.slane %v2801, 0
        %v2839 = vperm.slane %v2802, 0
        %v2840 = vperm.slane %v2803, 0
        %v2841 = vperm.slane %v2804, 0
        %v2842 = vperm.slane %v2805, 0
        %v2843 = vunpack.c.l.b16 %v2827
        %v2844 = vunpack.c.l.b16 %v2828
        %v2845 = vunpack.c.l.b16 %v2829
        %v2846 = vunpack.c.l.b16 %v2830
        %v2847 = vunpack.c.l.b16 %v2831
        %v2848 = vunpack.c.l.b16 %v2832
        %v2849 = vunpack.c.l.b16 %v2833
        %v2850 = vunpack.c.l.b16 %v2834
        %v2851 = vunpack.c.l.b16 %v2835
        %v2852 = vunpack.c.l.b16 %v2836
        %v2853 = vunpack.c.l.b16 %v2837
        %v2854 = vunpack.c.l.b16 %v2838
        %v2855 = vunpack.c.l.b16 %v2839
        %v2856 = vunpack.c.l.b16 %v2840
        %v2857 = vunpack.c.l.b16 %v2841
        %v2858 = vunpack.c.l.b16 %v2842
        %v2859 = vsel %vm535, %v2844, %v2843
        %v2860 = vsel %vm539, %v2845, %v2859
        %v2861 = vsel %vm543, %v2846, %v2860
        %vm2862 = vcmask 1044484
        %v2863 = vsel %vm2862, %v2847, %v2861
        %vm2864 = vcmask 1045509
        %v2865 = vsel %vm2864, %v2848, %v2863
        %vm2866 = vcmask 1046534
        %v2867 = vsel %vm2866, %v2849, %v2865
        %vm2868 = vcmask 1047559
        %v2869 = vsel %vm2868, %v2850, %v2867
        %v2870 = vsel %vm535, %v2852, %v2851
        %v2871 = vsel %vm539, %v2853, %v2870
        %v2872 = vsel %vm543, %v2854, %v2871
        %v2873 = vsel %vm2862, %v2855, %v2872
        %v2874 = vsel %vm2864, %v2856, %v2873
        %v2875 = vsel %vm2866, %v2857, %v2874
        %v2876 = vsel %vm2868, %v2858, %v2875
        %v2877 = vpack.c.b16 %v2876, %v2869
        %2878 = vrot.lane.b32.xlu0 %v2877, 44
        %v2879 = vpop.permute.xlu0 %2878
        %2880 = vrot.lane.b32.xlu0 %v1376, 92
        %v2881 = vpop.permute.xlu0 %2880
        %vm2882 = vcmask 359424
        %v2885 = vsel %vm2882, %v2810, %v2879
        %vm2886 = vcmask 752640
        %v2888 = vsel %vm2886, %v2885, %v2881
        %v2890 = vld [vmem:[%s7] sm:$0xf]
        %v2891 = vld [vmem:[%s7 + $0x4] sm:$0xf]
        %v2892 = vld [vmem:[%s7 + $0x8] sm:$0xf]
        %v2893 = vld [vmem:[%s7 + $0xc] sm:$0xf]
        %v2894 = vld [vmem:[%s7 + $0x10] sm:$0xf]
        %v2895 = vld [vmem:[%s7 + $0x14] sm:$0xf]
        %v2896 = vld [vmem:[%s7 + $0x18] sm:$0xf]
        %v2897 = vld [vmem:[%s7 + $0x1c] sm:$0xf]
        %v2898 = vld [vmem:[%s7 + $0x20] sm:$0xf]
        %v2899 = vld [vmem:[%s7 + $0x24] sm:$0xf]
        %v2900 = vld [vmem:[%s7 + $0x28] sm:$0xf]
        %v2901 = vld [vmem:[%s7 + $0x2c] sm:$0xf]
        %v2902 = vld [vmem:[%s7 + $0x30] sm:$0xf]
        %v2903 = vld [vmem:[%s7 + $0x34] sm:$0xf]
        %v2904 = vld [vmem:[%s7 + $0x38] sm:$0xf]
        %v2905 = vld [vmem:[%s7 + $0x3c] sm:$0xf]
        %v2906 = vld [vmem:[%s7 + $0x40] sm:$0xf]
        %v2907 = vld [vmem:[%s7 + $0x44] sm:$0x3]
        %v2908 = vld [vmem:[%s8] sm:$0x1]
        %v2910 = vperm.slane %v2908, 0
        %v2930 = vunpack.c.l.b16 %v2890
        %v2931 = vunpack.c.l.b16 %v2891
        %v2932 = vunpack.c.l.b16 %v2892
        %v2933 = vunpack.c.l.b16 %v2893
        %v2934 = vunpack.c.l.b16 %v2894
        %v2935 = vunpack.c.l.b16 %v2895
        %v2936 = vunpack.c.l.b16 %v2896
        %v2937 = vunpack.c.l.b16 %v2897
        %v2938 = vunpack.c.l.b16 %v2898
        %v2939 = vunpack.c.l.b16 %v2899
        %v2940 = vunpack.c.l.b16 %v2900
        %v2941 = vunpack.c.l.b16 %v2901
        %v2942 = vunpack.c.l.b16 %v2902
        %v2943 = vunpack.c.l.b16 %v2903
        %v2944 = vunpack.c.l.b16 %v2904
        %v2945 = vunpack.c.l.b16 %v2905
        %v2946 = vunpack.c.l.b16 %v2906
        %v2947 = vunpack.c.l.b16 %v2907
        %v2948 = vpack.c.b16 %v2931, %v2930
        %v2949 = vpack.c.b16 %v2933, %v2932
        %v2950 = vpack.c.b16 %v2935, %v2934
        %v2951 = vpack.c.b16 %v2937, %v2936
        %v2952 = vpack.c.b16 %v2939, %v2938
        %v2953 = vpack.c.b16 %v2941, %v2940
        %v2954 = vpack.c.b16 %v2943, %v2942
        %v2955 = vpack.c.b16 %v2945, %v2944
        %v2956 = vpack.c.b16 %v2947, %v2946
        %vm2965 = vcmask 97280
        %v2966 = vsel %vm2965, %v2881, 0
        %vm2968 = vcmask 1045504
        %v2970 = vsel %vm2968, %v2956, 0
        %2972 = vmatpush.bf16.msra.mxu0 %v2955
        %2973 = vmatpush.bf16.msra.mxu0 %v2954
        %2974 = vmatpush.bf16.msra.mxu0 %v2953
        %2975 = vmatpush.bf16.msra.mxu0 %v2952
        %2976 = vmatpush.bf16.msra.mxu0 %v2951
        %2977 = vmatpush.bf16.msra.mxu0 %v2950
        %2978 = vmatpush.bf16.msra.mxu0 %v2949
        %2979 = vmatpush.bf16.msra.mxu0 %v2948
        %2980 = vmatmul.bf16.gmra.mxu0 %v2888
        %v2981 = vpop.f32.mrf.mxu0
        %v2982 = vadd.f32 %v2910, %v2981
        %v2983 = vpop.f32.mrf.mxu0
        %v2984 = vadd.f32 %v2910, %v2983
        %2985 = vdwg.mxu0
        %2986 = vmatpush.bf16.msra.mxu0 0
        %2987 = vmatpush.bf16.msra.mxu0 0
        %2988 = vmatpush.bf16.msra.mxu0 0
        %2989 = vmatpush.bf16.msra.mxu0 0
        %2990 = vmatpush.bf16.msra.mxu0 0
        %2991 = vmatpush.bf16.msra.mxu0 0
        %2992 = vmatpush.bf16.msra.mxu0 0
        %2993 = vmatpush.bf16.msra.mxu0 %v2970
        %2994 = vmatmul.bf16.gmra.mxu0 %v2966
        %v2995 = vpop.f32.mrf.mxu0
        %v2996 = vadd.f32 %v2982, %v2995
        %v2997 = vpop.f32.mrf.mxu0
        %v2998 = vadd.f32 %v2984, %v2997
        %2999 = vdwg.mxu0
        %vm3000 = vcmp.gt.f32.partialorder %v2996, 0.0
        %vm3001 = vcmp.gt.f32.partialorder %v2998, 0.0
        %v3002 = vstv %s522
        %v3003 = vmul.f32 %v3002, %v2996
        %v3004 = vmul.f32 %v3002, %v2998
        %v3005 = vsel %vm3000, %v2996, %v3003
        %v3006 = vsel %vm3001, %v2998, %v3004
        %v3007 = vpack.c.bf16 %v3006, %v3005
        %v3008 = vld [vmem:[%s9] sm:$0xf]
        %v3009 = vld [vmem:[%s9 + $0x4] sm:$0xf]
        %v3010 = vld [vmem:[%s9 + $0x8] sm:$0xf]
        %v3011 = vld [vmem:[%s9 + $0xc] sm:$0xf]
        %v3012 = vld [vmem:[%s9 + $0x10] sm:$0xf]
        %v3013 = vld [vmem:[%s9 + $0x14] sm:$0xf]
        %v3014 = vld [vmem:[%s9 + $0x18] sm:$0xf]
        %v3015 = vld [vmem:[%s9 + $0x1c] sm:$0xf]
        %v3016 = vld [vmem:[%s9 + $0x20] sm:$0xf]
        %v3017 = vld [vmem:[%s9 + $0x24] sm:$0xf]
        %v3018 = vld [vmem:[%s9 + $0x28] sm:$0xf]
        %v3019 = vld [vmem:[%s9 + $0x2c] sm:$0xf]
        %v3020 = vld [vmem:[%s9 + $0x30] sm:$0xf]
        %v3021 = vld [vmem:[%s9 + $0x34] sm:$0xf]
        %v3022 = vld [vmem:[%s9 + $0x38] sm:$0xf]
        %v3023 = vld [vmem:[%s9 + $0x3c] sm:$0xf]
        %v3024 = vld [vmem:[%s10] sm:$0x1]
        %v3026 = vperm.slane %v3024, 0
        %v3044 = vunpack.c.l.b16 %v3008
        %v3045 = vunpack.c.l.b16 %v3009
        %v3046 = vunpack.c.l.b16 %v3010
        %v3047 = vunpack.c.l.b16 %v3011
        %v3048 = vunpack.c.l.b16 %v3012
        %v3049 = vunpack.c.l.b16 %v3013
        %v3050 = vunpack.c.l.b16 %v3014
        %v3051 = vunpack.c.l.b16 %v3015
        %v3052 = vunpack.c.l.b16 %v3016
        %v3053 = vunpack.c.l.b16 %v3017
        %v3054 = vunpack.c.l.b16 %v3018
        %v3055 = vunpack.c.l.b16 %v3019
        %v3056 = vunpack.c.l.b16 %v3020
        %v3057 = vunpack.c.l.b16 %v3021
        %v3058 = vunpack.c.l.b16 %v3022
        %v3059 = vunpack.c.l.b16 %v3023
        %v3060 = vpack.c.b16 %v3045, %v3044
        %v3061 = vpack.c.b16 %v3047, %v3046
        %v3062 = vpack.c.b16 %v3049, %v3048
        %v3063 = vpack.c.b16 %v3051, %v3050
        %v3064 = vpack.c.b16 %v3053, %v3052
        %v3065 = vpack.c.b16 %v3055, %v3054
        %v3066 = vpack.c.b16 %v3057, %v3056
        %v3067 = vpack.c.b16 %v3059, %v3058
        %3076 = vmatpush.bf16.msra.mxu0 %v3067
        %3077 = vmatpush.bf16.msra.mxu0 %v3066
        %3078 = vmatpush.bf16.msra.mxu0 %v3065
        %3079 = vmatpush.bf16.msra.mxu0 %v3064
        %3080 = vmatpush.bf16.msra.mxu0 %v3063
        %3081 = vmatpush.bf16.msra.mxu0 %v3062
        %3082 = vmatpush.bf16.msra.mxu0 %v3061
        %3083 = vmatpush.bf16.msra.mxu0 %v3060
        %3084 = vmatmul.bf16.gmra.mxu0 %v3007
        %v3085 = vpop.f32.mrf.mxu0
        %v3086 = vadd.f32 %v3026, %v3085
        %v3087 = vpop.f32.mrf.mxu0
        %v3088 = vadd.f32 %v3026, %v3087
        %3089 = vdwg.mxu0
        %vm3090 = vcmp.gt.f32.partialorder %v3086, 0.0
        %vm3091 = vcmp.gt.f32.partialorder %v3088, 0.0
        %v3092 = vstv %s523
        %v3093 = vmul.f32 %v3092, %v3086
        %v3094 = vmul.f32 %v3092, %v3088
        %v3095 = vsel %vm3090, %v3086, %v3093
        %v3096 = vsel %vm3091, %v3088, %v3094
        %v3097 = vld [vmem:[%s11] sm:$0x1]
        %v3099 = vperm.slane %v3097, 0
        %v3101 = vmul.f32 %v3095, %v3099
        %v3102 = vmul.f32 %v3096, %v3099
        %vm3103 = vcmask 523264
        %v3104 = vsel %vm3103, %v3101, 0.0
        %3105 = vadd.xlane.f32.xlu0 %v3104
        %v3106 = vpop.xlane.xlu0 %3105
        %v3107 = vsel %vm3103, %v3102, 0.0
        %3108 = vadd.xlane.f32.xlu0 %v3107
        %v3109 = vpop.xlane.xlu0 %3108
        %v3110 = vstv %s525
        %v3111 = vadd.f32 %v3106, %v3110
        %v3112 = vadd.f32 %v3109, %v3110
        %v3113 = vxor.u32 %v3111, 2147483648
        %v3114 = vxor.u32 %v3112, 2147483648
        %v3115 = vmul.f32 %v3113, 1.442695
        %v3116 = vpow.pop %v3115
        %v3117 = vmul.f32 %v3114, 1.442695
        %v3118 = vpow.pop %v3117
        %v3119 = vadd.f32 %v3116, 1.0
        %v3120 = vadd.f32 %v3118, 1.0
        %v3121 = vrcp.pop %v3119
        %v3122 = vmul.f32 %v3119, %v3121
        %v3123 = vsub.f32 1.0, %v3122
        %v3124 = vmul.f32 %v3121, %v3123
        %v3125 = vadd.f32 %v3121, %v3124
        %vm3126 = vweird.f32 %v3119
        %vm3127 = vweird.f32 %v3121
        %vm3128 = vmor %vm3126, %vm3127
        %v3129 = vsel %vm3128, %v3121, %v3125
        %v3130 = vand.u32 2147483647, %v3119
        %vm3131 = vcmp.eq.f32.partialorder %v3130, 8.507059e+37
        %v3132 = vand.u32 %v3119, 2147483648
        %v3133 = vor.u32 1.1754944e-38, %v3132
        %v3134 = vsel %vm3131, %v3133, %v3129
        %v3135 = vmul.f32 1.0, %v3134
        %v3136 = vrcp.pop %v3120
        %v3137 = vmul.f32 %v3120, %v3136
        %v3138 = vsub.f32 1.0, %v3137
        %v3139 = vmul.f32 %v3136, %v3138
        %v3140 = vadd.f32 %v3136, %v3139
        %vm3141 = vweird.f32 %v3120
        %vm3142 = vweird.f32 %v3136
        %vm3143 = vmor %vm3141, %vm3142
        %v3144 = vsel %vm3143, %v3136, %v3140
        %v3145 = vand.u32 2147483647, %v3120
        %vm3146 = vcmp.eq.f32.partialorder %v3145, 8.507059e+37
        %v3147 = vand.u32 %v3120, 2147483648
        %v3148 = vor.u32 1.1754944e-38, %v3147
        %v3149 = vsel %vm3146, %v3148, %v3144
        %v3150 = vmul.f32 1.0, %v3149
        %vm3151 = vcmask 7168
        %3152 = vst.msk [vmem:[%s500] sm:$0xff] %vm3151, %v3135
        %3153 = vst.msk [vmem:[%s500 + $0x8] sm:$0xff] %vm3151, %v3150
        %s3154 = smul.u32 2, %s25
        %p3155 = scmp.lt.s32.totalorder %s3154, 5
        %s3156 = scalar_select %p3155, %s3154, 5
        %s3157 = smul.addr %s3156, 8
        %s3158 = scalar_lea.vmem %s13, %s3157
        // Predicated region
        $region77: #{tpu_custom_call.1} parent=71 // pred_check
          %p3159 = pneg %p331
        $region78: #{tpu_custom_call.1} parent=71 // pred_check_branch
          %3161 = sbr.rel (%p3159) target = $region80
        $region79: #{tpu_custom_call.1} parent=71 // pred_region
          %s3162 = smul.u32 2, %s25
        $region80: #{tpu_custom_call.1} parent=71 // pred_fallthru
          _
      $region72: #{tpu_custom_call.1} parent=5 // pred_fallthru
        _
      %p3163 = scmp.le.s32.totalorder 2, %s20
      // Predicated region
      $region81: #{tpu_custom_call.1} parent=5 // pred_check
        %p3164 = pneg %p3163
      $region82: #{tpu_custom_call.1} parent=5 // pred_check_branch
        %3166 = sbr.rel (%p3164) target = $region84
      $region83: #{tpu_custom_call.1} parent=5 // pred_region
        %s3167 = ssub.s32 %s20, 2
        // Predicated region
        $region85: #{tpu_custom_call.1} parent=83 // pred_check
          %p3168 = pneg %p337
        $region86: #{tpu_custom_call.1} parent=83 // pred_check_branch
          %3170 = sbr.rel (%p3168) target = $region88
        $region87: #{tpu_custom_call.1} parent=83 // pred_region
          %s3171 = smul.u32 2, %s26
          %p3172 = scmp.lt.s32.totalorder %s3171, 5
          %s3173 = scalar_select %p3172, %s3171, 5
          %s3174 = smul.addr %s3173, 8
          %s3175 = scalar_lea.vmem %s13, %s3174
        $region88: #{tpu_custom_call.1} parent=83 // pred_fallthru
          _
      $region84: #{tpu_custom_call.1} parent=5 // pred_fallthru
        _
    $region6: #{tpu_custom_call.1} parent=1 // loop_footer
      %s24 = sadd.s32 1, %s20
    $region7: #{tpu_custom_call.1} parent=1 // loop_footer_branch
      %19 = sbr.rel target = $region3
    $region8: #{tpu_custom_call.1} parent=1 // loop_exit
      _
    %3176 = vsyncpa [#allocation3], 1
    %s3177 = scalar_lea.sflag [#allocation3], 1
    %3178 = vsyncpa %s3177, 1

</llo_original>
